<compile_context>
chip_gen: v7x
topology: tpu7x:2x2x1
jax: 0.10.0
libtpu: 0.0.40
codegen_flags: <defaults>
</compile_context>

<pallas_src>
import functools

import numpy as np
import jax
import jax.numpy as jnp
from jax.experimental import pallas as pl
from jax.experimental.pallas import tpu as pltpu


_LANE = 128
_VMEM_LIMIT = 48 * 1024 * 1024  # < v7x 64 MiB physical; ample on v5e/v6e


def _round_up(x, m):
    return ((x + m - 1) // m) * m


def _pick_tile(n_pad, candidates):
    """Largest candidate tile that divides the (already 128-padded) extent."""
    for c in candidates:
        if n_pad >= c and n_pad % c == 0:
            return c
    return n_pad


def _row_tile(n_pad):
    """Row tile: large, but leaves >=2 row tiles when possible (megacore)."""
    tm = _pick_tile(n_pad, (512, 256, 128))
    while tm > _LANE and n_pad // tm < 2:
        tm //= 2
    return tm


# ----------------------------- Pallas kernels ------------------------------


def _gcn_layer_kernel(h_ref, w_ref, s_ref, o_ref, acc_ref, *, tk):
    """out = leaky_relu(S @ (h @ W)); grid = (row_tiles, k_tiles).

    h and W are fully VMEM-resident; the k-th contraction chunk of XW is
    computed on the fly, so the only HBM stream is S.
    """
    k = pl.program_id(1)
    start = pl.multiple_of(k * tk, tk)
    xw = jnp.dot(h_ref[pl.ds(start, tk), :], w_ref[...],
                 preferred_element_type=jnp.float32)
    partial = jnp.dot(s_ref[...], xw.astype(s_ref.dtype),
                      preferred_element_type=jnp.float32)

    @pl.when(k == 0)
    def _init():
        acc_ref[...] = partial

    @pl.when(k != 0)
    def _accum():
        acc_ref[...] += partial

    @pl.when(k == pl.num_programs(1) - 1)
    def _store():
        a = acc_ref[...]
        o_ref[...] = jnp.where(a > 0, a, 0.01 * a).astype(o_ref.dtype)


def _gcn_last_kernel(h_ref, w_ref, s_ref, o_ref, p_ref, acc_ref, *, tk, f_real):
    """Last layer: leaky_relu(S @ (h @ W)) plus fused row softmax."""
    k = pl.program_id(1)
    start = pl.multiple_of(k * tk, tk)
    xw = jnp.dot(h_ref[pl.ds(start, tk), :], w_ref[...],
                 preferred_element_type=jnp.float32)
    partial = jnp.dot(s_ref[...], xw.astype(s_ref.dtype),
                      preferred_element_type=jnp.float32)

    @pl.when(k == 0)
    def _init():
        acc_ref[...] = partial

    @pl.when(k != 0)
    def _accum():
        acc_ref[...] += partial

    @pl.when(k == pl.num_programs(1) - 1)
    def _store():
        a = acc_ref[...]
        h = jnp.where(a > 0, a, 0.01 * a)          # leaky_relu, slope 0.01
        o_ref[...] = h.astype(o_ref.dtype)

        # Row softmax: padded lanes masked to -inf so they don't pollute the
        # max / denominator.  Exact reciprocal (cheap, EUP) so rows sum to 1.
        col = jax.lax.broadcasted_iota(jnp.int32, h.shape, 1)
        valid = col < f_real
        hm = jnp.where(valid, h, -jnp.inf)
        m = jnp.max(hm, axis=1, keepdims=True)
        e = jnp.where(valid, jnp.exp(hm - m), 0.0)
        denom = jnp.sum(e, axis=1, keepdims=True)
        p_ref[...] = (e * pl.reciprocal(denom, approx=False)).astype(p_ref.dtype)


# ----------------------------- pallas_call wrappers -------------------------


def _gcn_layer(h, w, s_p, *, out_dtype, tm, tk):
    n_pad = s_p.shape[0]
    f_in = h.shape[1]
    f_out = w.shape[1]
    kern = functools.partial(_gcn_layer_kernel, tk=tk)
    return pl.pallas_call(
        kern,
        out_shape=jax.ShapeDtypeStruct((n_pad, f_out), out_dtype),
        grid=(n_pad // tm, n_pad // tk),
        in_specs=[
            pl.BlockSpec((n_pad, f_in), lambda i, k: (0, 0)),   # h resident
            pl.BlockSpec((f_in, f_out), lambda i, k: (0, 0)),   # W resident
            pl.BlockSpec((tm, tk), lambda i, k: (i, k)),        # S streamed
        ],
        out_specs=pl.BlockSpec((tm, f_out), lambda i, k: (i, 0)),
        scratch_shapes=[pltpu.VMEM((tm, f_out), jnp.float32)],
        compiler_params=pltpu.CompilerParams(
            dimension_semantics=("parallel", "arbitrary"),
            vmem_limit_bytes=_VMEM_LIMIT),
    )(h, w, s_p)


def _gcn_last(h, w, s_p, *, f_real, tm, tk):
    n_pad = s_p.shape[0]
    f_in = h.shape[1]
    f_out = w.shape[1]
    kern = functools.partial(_gcn_last_kernel, tk=tk, f_real=f_real)
    return pl.pallas_call(
        kern,
        out_shape=(jax.ShapeDtypeStruct((n_pad, f_out), jnp.float32),   # out
                   jax.ShapeDtypeStruct((n_pad, f_out), jnp.float32)),  # prob
        grid=(n_pad // tm, n_pad // tk),
        in_specs=[
            pl.BlockSpec((n_pad, f_in), lambda i, k: (0, 0)),   # h resident
            pl.BlockSpec((f_in, f_out), lambda i, k: (0, 0)),   # W resident
            pl.BlockSpec((tm, tk), lambda i, k: (i, k)),        # S streamed
        ],
        out_specs=(pl.BlockSpec((tm, f_out), lambda i, k: (i, 0)),
                   pl.BlockSpec((tm, f_out), lambda i, k: (i, 0))),
        scratch_shapes=[pltpu.VMEM((tm, f_out), jnp.float32)],
        compiler_params=pltpu.CompilerParams(
            dimension_semantics=("parallel", "arbitrary"),
            vmem_limit_bytes=_VMEM_LIMIT),
    )(h, w, s_p)


# ----------------------------- Model wrapper -------------------------------


def glorot_init(key, input_dim, output_dim):
    init_range = np.sqrt(6.0 / (input_dim + output_dim))
    u = jax.random.uniform(key, (input_dim, output_dim), dtype=jnp.float32)
    return u * 2.0 * init_range - init_range


def init_aneci_params(key, input_dim, hidden):
    dims = [input_dim] + list(hidden)
    weights = []
    for i in range(len(hidden)):
        key, sub = jax.random.split(key)
        weights.append(glorot_init(sub, dims[i], dims[i + 1]))
    return weights


def aneci_prepare(support, weights, *, compute_dtype=jnp.bfloat16):
    """Hoisted, call-invariant preprocessing: pad + cast S and the weights.

    Do this ONCE, not per forward call — padding S is an O(N^2) HBM pass.
    """
    n = support.shape[0]
    n_pad = _round_up(max(n, _LANE), _LANE)
    dims_real = [weights[0].shape[0]] + [w.shape[1] for w in weights]
    dims_pad = [_round_up(max(d, _LANE), _LANE) for d in dims_real]

    s_p = jnp.pad(support.astype(compute_dtype),
                  ((0, n_pad - n), (0, n_pad - n)))
    w_pads = []
    for i, w in enumerate(weights):
        fi, fo = w.shape
        w_pads.append(jnp.pad(w.astype(compute_dtype),
                              ((0, dims_pad[i] - fi), (0, dims_pad[i + 1] - fo))))
    return s_p, w_pads


def aneci_forward_padded(x, s_p, w_pads, *, f_out_real,
                         compute_dtype=jnp.bfloat16):
    """Mirrors AnECI.forward (eval mode): returns (prob, out)."""
    n, f_in_real = x.shape
    n_pad = s_p.shape[0]
    f_in_pad = w_pads[0].shape[0]

    # Row tile (>=2 tiles when possible, for v7x megacore) and a large
    # contraction tile over S columns (mem-bound stream).
    tm = _row_tile(n_pad)
    tk = _pick_tile(n_pad, (1024, 512, 256, 128))

    # Pad the (small) per-call node features; single fused pad.
    h = jnp.pad(x.astype(compute_dtype),
                ((0, n_pad - n), (0, f_in_pad - f_in_real)))

    out = prob = None
    for li, w_p in enumerate(w_pads):
        if li < len(w_pads) - 1:
            h = _gcn_layer(h, w_p, s_p, out_dtype=compute_dtype, tm=tm, tk=tk)
        else:
            out, prob = _gcn_last(h, w_p, s_p, f_real=f_out_real, tm=tm, tk=tk)

    return prob[:n, :f_out_real], out[:n, :f_out_real]


def _reference(x, support, weights):
    """Pure-JAX f32 reference of AnECI.forward (eval mode)."""
    h = x
    for w in weights:
        h = jax.nn.leaky_relu(support @ (h @ w), negative_slope=0.01)
    prob = jax.nn.softmax(h, axis=1)
    return prob, h


# --------------------------------- main ------------------------------------

if __name__ == "__main__":
    key = jax.random.PRNGKey(0)

    # Small shapes consistent with the module: N nodes, feature dims.
    N = 8
    input_dim = 32
    hidden = [16, 8]           # hidden[-1] == output_dim
    output_dim = hidden[-1]
    dropout = [0.5, 0.5]       # unused at inference (eval mode)
    num_features_nonzero = 10  # unused at inference

    k_x, k_s, k_w = jax.random.split(key, 3)
    x = jax.random.normal(k_x, (N, input_dim), dtype=jnp.float32)
    # Dense "support" (normalized adjacency-like matrix).
    support = jax.random.uniform(k_s, (N, N), dtype=jnp.float32)
    support = support / jnp.sum(support, axis=1, keepdims=True)

    weights = init_aneci_params(k_w, input_dim, hidden)

    # Call-invariant prep (padded bf16 support + weights), hoisted out of the
    # forward pass.
    s_p, w_pads = aneci_prepare(support, weights)
    jax.block_until_ready((s_p, w_pads))

    fwd = jax.jit(functools.partial(aneci_forward_padded,
                                    f_out_real=output_dim))
    prob, out = fwd(x, s_p, w_pads)
    jax.block_until_ready((prob, out))

    ref_prob, ref_out = _reference(x, support, weights)

    # Sanity: shapes, softmax rows sum to ~1, and agreement with the f32
    # reference within bf16 tolerance.
    assert prob.shape == (N, output_dim)
    assert out.shape == (N, output_dim)
    assert np.allclose(np.asarray(jnp.sum(prob, axis=1)), 1.0, atol=2e-3)
    assert np.allclose(np.asarray(out), np.asarray(ref_out), rtol=0.1, atol=0.05)
    assert np.allclose(np.asarray(prob), np.asarray(ref_prob), rtol=0.1, atol=0.02)

    print("KERNEL_OK")
</pallas_src>

<mosaic_0001>
module attributes {stable_mosaic.version = 11 : i64} {
  func.func @_gcn_layer_kernel(%arg0: i32, %arg1: i32, %arg2: memref<128x128xbf16, #tpu.memory_space<vmem>>, %arg3: memref<128x128xbf16, #tpu.memory_space<vmem>>, %arg4: memref<128x128xbf16, #tpu.memory_space<vmem>>, %arg5: memref<128x128xbf16, #tpu.memory_space<vmem>>, %arg6: memref<128x128xf32, #tpu.memory_space<vmem>>) attributes {dimension_semantics = [#tpu.dimension_semantics<parallel>, #tpu.dimension_semantics<arbitrary>], iteration_bounds = array<i64: 1, 1>, scalar_prefetch = 0 : i64, scratch_operands = 1 : i64, tpu.core_type = #tpu.core_type<tc>, window_params = [{pipeline_mode = #tpu.pipeline_mode<synchronous>, transform_indices = @transform_0, window_bounds = array<i64: 128, 128>}, {pipeline_mode = #tpu.pipeline_mode<synchronous>, transform_indices = @transform_1, window_bounds = array<i64: 128, 128>}, {transform_indices = @transform_2, window_bounds = array<i64: 128, 128>}, {transform_indices = @transform_3, window_bounds = array<i64: 128, 128>}]} {
    %c128_i32 = arith.constant 128 : i32
    %0 = arith.muli %arg1, %c128_i32 : i32
    %1 = tpu.assume_multiple %0, 128 : i32
    %2 = arith.index_cast %1 : i32 to index
    %c0 = arith.constant 0 : index
    %3 = vector.load %arg2[%2, %c0] : memref<128x128xbf16, #tpu.memory_space<vmem>>, vector<128x128xbf16>
    %c0_0 = arith.constant 0 : index
    %c0_1 = arith.constant 0 : index
    %4 = vector.load %arg3[%c0_0, %c0_1] : memref<128x128xbf16, #tpu.memory_space<vmem>>, vector<128x128xbf16>
    %cst = arith.constant dense<0.000000e+00> : vector<128x128xf32>
    %5 = tpu.matmul %3, %4, %cst {dimension_numbers = #tpu.dot_dimension_numbers<[1], [0], [0], [1], [0, 0, 1, 1], [], []>} : vector<128x128xbf16>, vector<128x128xbf16>, vector<128x128xf32> -> vector<128x128xf32>
    %c0_2 = arith.constant 0 : index
    %c0_3 = arith.constant 0 : index
    %6 = vector.load %arg4[%c0_2, %c0_3] : memref<128x128xbf16, #tpu.memory_space<vmem>>, vector<128x128xbf16>
    %7 = arith.truncf %5 : vector<128x128xf32> to vector<128x128xbf16>
    %cst_4 = arith.constant dense<0.000000e+00> : vector<128x128xf32>
    %8 = tpu.matmul %6, %7, %cst_4 {dimension_numbers = #tpu.dot_dimension_numbers<[1], [0], [0], [1], [0, 0, 1, 1], [], []>} : vector<128x128xbf16>, vector<128x128xbf16>, vector<128x128xf32> -> vector<128x128xf32>
    %c0_i32 = arith.constant 0 : i32
    %9 = arith.cmpi eq, %arg1, %c0_i32 : i32
    %10 = arith.extui %9 : i1 to i32
    %c0_i32_5 = arith.constant 0 : i32
    %11 = arith.cmpi ne, %10, %c0_i32_5 : i32
    scf.if %11 {
      %c0_10 = arith.constant 0 : index
      %c0_11 = arith.constant 0 : index
      %18 = vector.load %arg6[%c0_10, %c0_11] : memref<128x128xf32, #tpu.memory_space<vmem>>, vector<128x128xf32>
      tpu.vector_store %arg6[%c0_10, %c0_11], %8 {strides = array<i32>} : memref<128x128xf32, #tpu.memory_space<vmem>>, vector<128x128xf32>,
    } else {
    }
    %c0_i32_6 = arith.constant 0 : i32
    %12 = arith.cmpi ne, %arg1, %c0_i32_6 : i32
    %13 = arith.extui %12 : i1 to i32
    %c0_i32_7 = arith.constant 0 : i32
    %14 = arith.cmpi ne, %13, %c0_i32_7 : i32
    scf.if %14 {
      %c0_10 = arith.constant 0 : index
      %c0_11 = arith.constant 0 : index
      %18 = vector.load %arg6[%c0_10, %c0_11] : memref<128x128xf32, #tpu.memory_space<vmem>>, vector<128x128xf32>
      %19 = arith.addf %18, %8 : vector<128x128xf32>
      %c0_12 = arith.constant 0 : index
      %c0_13 = arith.constant 0 : index
      %20 = vector.load %arg6[%c0_12, %c0_13] : memref<128x128xf32, #tpu.memory_space<vmem>>, vector<128x128xf32>
      tpu.vector_store %arg6[%c0_12, %c0_13], %19 {strides = array<i32>} : memref<128x128xf32, #tpu.memory_space<vmem>>, vector<128x128xf32>,
    } else {
    }
    %c0_i32_8 = arith.constant 0 : i32
    %15 = arith.cmpi eq, %arg1, %c0_i32_8 : i32
    %16 = arith.extui %15 : i1 to i32
    %c0_i32_9 = arith.constant 0 : i32
    %17 = arith.cmpi ne, %16, %c0_i32_9 : i32
    scf.if %17 {
      %c0_10 = arith.constant 0 : index
      %c0_11 = arith.constant 0 : index
      %18 = vector.load %arg6[%c0_10, %c0_11] : memref<128x128xf32, #tpu.memory_space<vmem>>, vector<128x128xf32>
      %cst_12 = arith.constant 0.000000e+00 : f32
      %19 = vector.broadcast %cst_12 : f32 to vector<128x128xf32>
      %20 = arith.cmpf ogt, %18, %19 : vector<128x128xf32>
      %cst_13 = arith.constant 0.00999999977 : f32
      %21 = vector.broadcast %cst_13 : f32 to vector<128x128xf32>
      %22 = arith.mulf %21, %18 : vector<128x128xf32>
      %23 = arith.select %20, %18, %22 : vector<128x128xi1>, vector<128x128xf32>
      %24 = arith.truncf %23 : vector<128x128xf32> to vector<128x128xbf16>
      %c0_14 = arith.constant 0 : index
      %c0_15 = arith.constant 0 : index
      %25 = vector.load %arg5[%c0_14, %c0_15] : memref<128x128xbf16, #tpu.memory_space<vmem>>, vector<128x128xbf16>
      tpu.vector_store %arg5[%c0_14, %c0_15], %24 {strides = array<i32>} : memref<128x128xbf16, #tpu.memory_space<vmem>>, vector<128x128xbf16>,
    } else {
    }
    return
  }
  func.func @transform_0(%arg0: i32, %arg1: i32) -> (i32, i32) {
    %c0_i32 = arith.constant 0 : i32
    %c0_i32_0 = arith.constant 0 : i32
    %c0_i32_1 = arith.constant 0 : i32
    return %c0_i32, %c0_i32_0 : i32, i32
  }
  func.func @transform_1(%arg0: i32, %arg1: i32) -> (i32, i32) {
    %c0_i32 = arith.constant 0 : i32
    %c0_i32_0 = arith.constant 0 : i32
    %c0_i32_1 = arith.constant 0 : i32
    return %c0_i32, %c0_i32_0 : i32, i32
  }
  func.func @transform_2(%arg0: i32, %arg1: i32) -> (i32, i32) {
    %c0_i32 = arith.constant 0 : i32
    return %arg0, %arg1 : i32, i32
  }
  func.func @transform_3(%arg0: i32, %arg1: i32) -> (i32, i32) {
    %c0_i32 = arith.constant 0 : i32
    %c0_i32_0 = arith.constant 0 : i32
    return %arg0, %c0_i32 : i32, i32
  }
}

module attributes {stable_mosaic.version = 11 : i64} {
  func.func @_gcn_last_kernel(%arg0: i32, %arg1: i32, %arg2: memref<128x128xbf16, #tpu.memory_space<vmem>>, %arg3: memref<128x128xbf16, #tpu.memory_space<vmem>>, %arg4: memref<128x128xbf16, #tpu.memory_space<vmem>>, %arg5: memref<128x128xf32, #tpu.memory_space<vmem>>, %arg6: memref<128x128xf32, #tpu.memory_space<vmem>>, %arg7: memref<128x128xf32, #tpu.memory_space<vmem>>) attributes {dimension_semantics = [#tpu.dimension_semantics<parallel>, #tpu.dimension_semantics<arbitrary>], iteration_bounds = array<i64: 1, 1>, scalar_prefetch = 0 : i64, scratch_operands = 1 : i64, tpu.core_type = #tpu.core_type<tc>, window_params = [{pipeline_mode = #tpu.pipeline_mode<synchronous>, transform_indices = @transform_0, window_bounds = array<i64: 128, 128>}, {pipeline_mode = #tpu.pipeline_mode<synchronous>, transform_indices = @transform_1, window_bounds = array<i64: 128, 128>}, {transform_indices = @transform_2, window_bounds = array<i64: 128, 128>}, {transform_indices = @transform_3, window_bounds = array<i64: 128, 128>}, {transform_indices = @transform_4, window_bounds = array<i64: 128, 128>}]} {
    %c128_i32 = arith.constant 128 : i32
    %0 = arith.muli %arg1, %c128_i32 : i32
    %1 = tpu.assume_multiple %0, 128 : i32
    %2 = arith.index_cast %1 : i32 to index
    %c0 = arith.constant 0 : index
    %3 = vector.load %arg2[%2, %c0] : memref<128x128xbf16, #tpu.memory_space<vmem>>, vector<128x128xbf16>
    %c0_0 = arith.constant 0 : index
    %c0_1 = arith.constant 0 : index
    %4 = vector.load %arg3[%c0_0, %c0_1] : memref<128x128xbf16, #tpu.memory_space<vmem>>, vector<128x128xbf16>
    %cst = arith.constant dense<0.000000e+00> : vector<128x128xf32>
    %5 = tpu.matmul %3, %4, %cst {dimension_numbers = #tpu.dot_dimension_numbers<[1], [0], [0], [1], [0, 0, 1, 1], [], []>} : vector<128x128xbf16>, vector<128x128xbf16>, vector<128x128xf32> -> vector<128x128xf32>
    %c0_2 = arith.constant 0 : index
    %c0_3 = arith.constant 0 : index
    %6 = vector.load %arg4[%c0_2, %c0_3] : memref<128x128xbf16, #tpu.memory_space<vmem>>, vector<128x128xbf16>
    %7 = arith.truncf %5 : vector<128x128xf32> to vector<128x128xbf16>
    %cst_4 = arith.constant dense<0.000000e+00> : vector<128x128xf32>
    %8 = tpu.matmul %6, %7, %cst_4 {dimension_numbers = #tpu.dot_dimension_numbers<[1], [0], [0], [1], [0, 0, 1, 1], [], []>} : vector<128x128xbf16>, vector<128x128xbf16>, vector<128x128xf32> -> vector<128x128xf32>
    %c0_i32 = arith.constant 0 : i32
    %9 = arith.cmpi eq, %arg1, %c0_i32 : i32
    %10 = arith.extui %9 : i1 to i32
    %c0_i32_5 = arith.constant 0 : i32
    %11 = arith.cmpi ne, %10, %c0_i32_5 : i32
    scf.if %11 {
      %c0_10 = arith.constant 0 : index
      %c0_11 = arith.constant 0 : index
      %18 = vector.load %arg7[%c0_10, %c0_11] : memref<128x128xf32, #tpu.memory_space<vmem>>, vector<128x128xf32>
      tpu.vector_store %arg7[%c0_10, %c0_11], %8 {strides = array<i32>} : memref<128x128xf32, #tpu.memory_space<vmem>>, vector<128x128xf32>,
    } else {
    }
    %c0_i32_6 = arith.constant 0 : i32
    %12 = arith.cmpi ne, %arg1, %c0_i32_6 : i32
    %13 = arith.extui %12 : i1 to i32
    %c0_i32_7 = arith.constant 0 : i32
    %14 = arith.cmpi ne, %13, %c0_i32_7 : i32
    scf.if %14 {
      %c0_10 = arith.constant 0 : index
      %c0_11 = arith.constant 0 : index
      %18 = vector.load %arg7[%c0_10, %c0_11] : memref<128x128xf32, #tpu.memory_space<vmem>>, vector<128x128xf32>
      %19 = arith.addf %18, %8 : vector<128x128xf32>
      %c0_12 = arith.constant 0 : index
      %c0_13 = arith.constant 0 : index
      %20 = vector.load %arg7[%c0_12, %c0_13] : memref<128x128xf32, #tpu.memory_space<vmem>>, vector<128x128xf32>
      tpu.vector_store %arg7[%c0_12, %c0_13], %19 {strides = array<i32>} : memref<128x128xf32, #tpu.memory_space<vmem>>, vector<128x128xf32>,
    } else {
    }
    %c0_i32_8 = arith.constant 0 : i32
    %15 = arith.cmpi eq, %arg1, %c0_i32_8 : i32
    %16 = arith.extui %15 : i1 to i32
    %c0_i32_9 = arith.constant 0 : i32
    %17 = arith.cmpi ne, %16, %c0_i32_9 : i32
    scf.if %17 {
      %c0_10 = arith.constant 0 : index
      %c0_11 = arith.constant 0 : index
      %18 = vector.load %arg7[%c0_10, %c0_11] : memref<128x128xf32, #tpu.memory_space<vmem>>, vector<128x128xf32>
      %cst_12 = arith.constant 0.000000e+00 : f32
      %19 = vector.broadcast %cst_12 : f32 to vector<128x128xf32>
      %20 = arith.cmpf ogt, %18, %19 : vector<128x128xf32>
      %cst_13 = arith.constant 0.00999999977 : f32
      %21 = vector.broadcast %cst_13 : f32 to vector<128x128xf32>
      %22 = arith.mulf %21, %18 : vector<128x128xf32>
      %23 = arith.select %20, %18, %22 : vector<128x128xi1>, vector<128x128xf32>
      %c0_14 = arith.constant 0 : index
      %c0_15 = arith.constant 0 : index
      %24 = vector.load %arg5[%c0_14, %c0_15] : memref<128x128xf32, #tpu.memory_space<vmem>>, vector<128x128xf32>
      tpu.vector_store %arg5[%c0_14, %c0_15], %23 {strides = array<i32>} : memref<128x128xf32, #tpu.memory_space<vmem>>, vector<128x128xf32>,
      %25 = tpu.iota {dimensions = array<i32: 1>} : vector<128x128xi32>
      %c8_i32 = arith.constant 8 : i32
      %26 = vector.broadcast %c8_i32 : i32 to vector<128x128xi32>
      %27 = arith.cmpi slt, %25, %26 : vector<128x128xi32>
      %cst_16 = arith.constant 0xFF800000 : f32
      %28 = vector.broadcast %cst_16 : f32 to vector<128x128xf32>
      %29 = arith.select %27, %23, %28 : vector<128x128xi1>, vector<128x128xf32>
      %cst_17 = arith.constant dense<0xFF800000> : vector<128xf32>
      %30 = vector.multi_reduction <maximumf>, %29, %cst_17 [1] : vector<128x128xf32> to vector<128xf32>
      %31 = vector.shape_cast %30 : vector<128xf32> to vector<128x1xf32>
      %32 = vector.broadcast %31 : vector<128x1xf32> to vector<128x128xf32>
      %33 = arith.subf %29, %32 : vector<128x128xf32>
      %34 = math.exp %33 : vector<128x128xf32>
      %cst_18 = arith.constant 0.000000e+00 : f32
      %35 = vector.broadcast %cst_18 : f32 to vector<128x128xf32>
      %36 = arith.select %27, %34, %35 : vector<128x128xi1>, vector<128x128xf32>
      %cst_19 = arith.constant dense<0.000000e+00> : vector<128xf32>
      %37 = vector.multi_reduction <add>, %36, %cst_19 [1] : vector<128x128xf32> to vector<128xf32>
      %38 = vector.shape_cast %37 : vector<128xf32> to vector<128x1xf32>
      %39 = tpu.reciprocal %38 : vector<128x1xf32> -> vector<128x1xf32>
      %40 = vector.broadcast %39 : vector<128x1xf32> to vector<128x128xf32>
      %41 = arith.mulf %36, %40 : vector<128x128xf32>
      %c0_20 = arith.constant 0 : index
      %c0_21 = arith.constant 0 : index
      %42 = vector.load %arg6[%c0_20, %c0_21] : memref<128x128xf32, #tpu.memory_space<vmem>>, vector<128x128xf32>
      tpu.vector_store %arg6[%c0_20, %c0_21], %41 {strides = array<i32>} : memref<128x128xf32, #tpu.memory_space<vmem>>, vector<128x128xf32>,
    } else {
    }
    return
  }
  func.func @transform_0(%arg0: i32, %arg1: i32) -> (i32, i32) {
    %c0_i32 = arith.constant 0 : i32
    %c0_i32_0 = arith.constant 0 : i32
    %c0_i32_1 = arith.constant 0 : i32
    return %c0_i32, %c0_i32_0 : i32, i32
  }
  func.func @transform_1(%arg0: i32, %arg1: i32) -> (i32, i32) {
    %c0_i32 = arith.constant 0 : i32
    %c0_i32_0 = arith.constant 0 : i32
    %c0_i32_1 = arith.constant 0 : i32
    return %c0_i32, %c0_i32_0 : i32, i32
  }
  func.func @transform_2(%arg0: i32, %arg1: i32) -> (i32, i32) {
    %c0_i32 = arith.constant 0 : i32
    return %arg0, %arg1 : i32, i32
  }
  func.func @transform_3(%arg0: i32, %arg1: i32) -> (i32, i32) {
    %c0_i32 = arith.constant 0 : i32
    %c0_i32_0 = arith.constant 0 : i32
    return %arg0, %c0_i32 : i32, i32
  }
  func.func @transform_4(%arg0: i32, %arg1: i32) -> (i32, i32) {
    %c0_i32 = arith.constant 0 : i32
    %c0_i32_0 = arith.constant 0 : i32
    return %arg0, %c0_i32 : i32, i32
  }
}

</mosaic_0001>

<llo_original>
// kernel: aneci_forward_padded.2
$region0: #{aneci_forward_padded.2}
  #allocation0 [shape = 'u32[]', space=smem, size = 0x4, offset = 0x4, fixed_abs, tag = 'smem constant byte address 0x4 - core index']
  #allocation1 [shape = 'u32[144,128]{1,0:T(1,128)}', space=vmem, size = 0x12000, scoped, tag = 'internal scratch']
  #allocation2 [shape = 'f32[128,128]{1,0:T(8,128)}', space=vmem, size = 0x10000, scoped, tag = 'scratch operand']
  %s0 = inlined_call_operand.vmem [shape: bf16[128,128], index: 0, kind: input, shape index: {}]
  %s1 = inlined_call_operand.hbm [shape: bf16[128,128], index: 1, kind: input, shape index: {}]
  %s2 = inlined_call_operand.vmem [shape: bf16[128,128], index: 2, kind: input, shape index: {}]
  %s3 = inlined_call_operand.vmem [shape: bf16[128,128], index: 3, kind: output, shape index: {}]
  %s4 = sld [smem:[#allocation0]]
  $region38: #{aneci_forward_padded.2} parent=0
    _
  %s6 = ssub.s32 1, %s4
  %s7 = scalar_select 0, %s6, %s4
  $region1: #{aneci_forward_padded.2} parent=0
    #allocation3 [shape = 'u8[32768]{0}', space=vmem, size = 0x8000, scoped, tag = 'input window, operand 1, single buffered']
    #allocation4 [shape = 's32[1]{0}', space=sflag, size = 0x4, scoped, tag = 'scoped memory for aneci_forward_padded.2']
    %8 = vsyncpa [#allocation4], 0
    // Predicated region
    $region2: #{aneci_forward_padded.2} parent=1 // pred_check
      _
    $region3: #{aneci_forward_padded.2} parent=1 // pred_check_branch
      %10 = sbr.rel (0) target = $region5
    $region4: #{aneci_forward_padded.2} parent=1 // pred_region
      _
    $region5: #{aneci_forward_padded.2} parent=1 // pred_fallthru
      _
    // Predicated region
    $region6: #{aneci_forward_padded.2} parent=1 // pred_check
      _
    $region7: #{aneci_forward_padded.2} parent=1 // pred_check_branch
      %12 = sbr.rel (0) target = $region9
    $region8: #{aneci_forward_padded.2} parent=1 // pred_region
      %s14 = ssub.s32 1024, 1024
      %15 = vsyncadd [#allocation4], %s14
      %s16 = sshll.u32 [#allocation3], 4
      %s17 = int_to_ptr.vmem [resolvable:$true] %s16
      %22 = dma.hbm_to_vmem [thread:$0]  %s1, 1024, %s17, [#allocation4], 64, 64, 4
    $region9: #{aneci_forward_padded.2} parent=1 // pred_fallthru
      _
    // Predicated region
    $region10: #{aneci_forward_padded.2} parent=1 // pred_check
      _
    $region11: #{aneci_forward_padded.2} parent=1 // pred_check_branch
      %24 = sbr.rel (0) target = $region13
    $region12: #{aneci_forward_padded.2} parent=1 // pred_region
      _
    $region13: #{aneci_forward_padded.2} parent=1 // pred_fallthru
      _
    // Predicated region
    $region14: #{aneci_forward_padded.2} parent=1 // pred_check
      _
    $region15: #{aneci_forward_padded.2} parent=1 // pred_check_branch
      %26 = sbr.rel (0) target = $region17
    $region16: #{aneci_forward_padded.2} parent=1 // pred_region
      %27 = dma.done [#allocation4], 1024
    $region17: #{aneci_forward_padded.2} parent=1 // pred_fallthru
      _
    %s29 = smul.u32 0, 128
    %s30 = sshra.s32 %s29, 3
    %s31 = sand.u32 %s29, 7
    %s32 = smul.addr %s30, 4
    %s33 = scalar_lea.vmem %s0, %s32
    %v34 = vld [vmem:[%s33] sm:$0xf]
    %v35 = vld [vmem:[%s33 + $0x4] sm:$0xf]
    %v36 = vld [vmem:[%s33 + $0x8] sm:$0xf]
    %v37 = vld [vmem:[%s33 + $0xc] sm:$0xf]
    %v38 = vld [vmem:[%s33 + $0x10] sm:$0xf]
    %v39 = vld [vmem:[%s33 + $0x14] sm:$0xf]
    %v40 = vld [vmem:[%s33 + $0x18] sm:$0xf]
    %v41 = vld [vmem:[%s33 + $0x1c] sm:$0xf]
    %v42 = vld [vmem:[%s33 + $0x20] sm:$0xf]
    %v43 = vld [vmem:[%s33 + $0x24] sm:$0xf]
    %v44 = vld [vmem:[%s33 + $0x28] sm:$0xf]
    %v45 = vld [vmem:[%s33 + $0x2c] sm:$0xf]
    %v46 = vld [vmem:[%s33 + $0x30] sm:$0xf]
    %v47 = vld [vmem:[%s33 + $0x34] sm:$0xf]
    %v48 = vld [vmem:[%s33 + $0x38] sm:$0xf]
    %v49 = vld [vmem:[%s33 + $0x3c] sm:$0xf]
    %v50 = vld [vmem:[#allocation3] sm:$0xf]
    %v51 = vld [vmem:[#allocation3 + $0x4] sm:$0xf]
    %v52 = vld [vmem:[#allocation3 + $0x8] sm:$0xf]
    %v53 = vld [vmem:[#allocation3 + $0xc] sm:$0xf]
    %v54 = vld [vmem:[#allocation3 + $0x10] sm:$0xf]
    %v55 = vld [vmem:[#allocation3 + $0x14] sm:$0xf]
    %v56 = vld [vmem:[#allocation3 + $0x18] sm:$0xf]
    %v57 = vld [vmem:[#allocation3 + $0x1c] sm:$0xf]
    %v58 = vld [vmem:[#allocation3 + $0x20] sm:$0xf]
    %v59 = vld [vmem:[#allocation3 + $0x24] sm:$0xf]
    %v60 = vld [vmem:[#allocation3 + $0x28] sm:$0xf]
    %v61 = vld [vmem:[#allocation3 + $0x2c] sm:$0xf]
    %v62 = vld [vmem:[#allocation3 + $0x30] sm:$0xf]
    %v63 = vld [vmem:[#allocation3 + $0x34] sm:$0xf]
    %v64 = vld [vmem:[#allocation3 + $0x38] sm:$0xf]
    %v65 = vld [vmem:[#allocation3 + $0x3c] sm:$0xf]
    %v82 = vunpack.c.l.b16 %v34
    %v83 = vunpack.c.l.b16 %v35
    %v84 = vunpack.c.l.b16 %v36
    %v85 = vunpack.c.l.b16 %v37
    %v86 = vunpack.c.l.b16 %v38
    %v87 = vunpack.c.l.b16 %v39
    %v88 = vunpack.c.l.b16 %v40
    %v89 = vunpack.c.l.b16 %v41
    %v90 = vunpack.c.l.b16 %v42
    %v91 = vunpack.c.l.b16 %v43
    %v92 = vunpack.c.l.b16 %v44
    %v93 = vunpack.c.l.b16 %v45
    %v94 = vunpack.c.l.b16 %v46
    %v95 = vunpack.c.l.b16 %v47
    %v96 = vunpack.c.l.b16 %v48
    %v97 = vunpack.c.l.b16 %v49
    %v98 = vpack.c.b16 %v83, %v82
    %v99 = vpack.c.b16 %v85, %v84
    %v100 = vpack.c.b16 %v87, %v86
    %v101 = vpack.c.b16 %v89, %v88
    %v102 = vpack.c.b16 %v91, %v90
    %v103 = vpack.c.b16 %v93, %v92
    %v104 = vpack.c.b16 %v95, %v94
    %v105 = vpack.c.b16 %v97, %v96
    %v130 = vunpack.c.l.b16 %v50
    %v131 = vunpack.c.l.b16 %v51
    %v132 = vunpack.c.l.b16 %v52
    %v133 = vunpack.c.l.b16 %v53
    %v134 = vunpack.c.l.b16 %v54
    %v135 = vunpack.c.l.b16 %v55
    %v136 = vunpack.c.l.b16 %v56
    %v137 = vunpack.c.l.b16 %v57
    %v138 = vunpack.c.l.b16 %v58
    %v139 = vunpack.c.l.b16 %v59
    %v140 = vunpack.c.l.b16 %v60
    %v141 = vunpack.c.l.b16 %v61
    %v142 = vunpack.c.l.b16 %v62
    %v143 = vunpack.c.l.b16 %v63
    %v144 = vunpack.c.l.b16 %v64
    %v145 = vunpack.c.l.b16 %v65
    %v146 = vpack.c.b16 %v131, %v130
    %v147 = vpack.c.b16 %v133, %v132
    %v148 = vpack.c.b16 %v135, %v134
    %v149 = vpack.c.b16 %v137, %v136
    %v150 = vpack.c.b16 %v139, %v138
    %v151 = vpack.c.b16 %v141, %v140
    %v152 = vpack.c.b16 %v143, %v142
    %v153 = vpack.c.b16 %v145, %v144
    %162 = vmatprep.subr.bf16.mxu0 0
    %163 = vmatpush1.bf16.msra.mxu0 %v146
    %164 = vmatprep.subr.bf16.mxu0 0
    %165 = vmatpush1.bf16.msra.mxu0 %v147
    %166 = vmatprep.subr.bf16.mxu0 0
    %167 = vmatpush1.bf16.msra.mxu0 %v148
    %168 = vmatprep.subr.bf16.mxu0 0
    %169 = vmatpush1.bf16.msra.mxu0 %v149
    %170 = vmatprep.subr.bf16.mxu0 0
    %171 = vmatpush1.bf16.msra.mxu0 %v150
    %172 = vmatprep.subr.bf16.mxu0 0
    %173 = vmatpush1.bf16.msra.mxu0 %v151
    %174 = vmatprep.subr.bf16.mxu0 0
    %175 = vmatpush1.bf16.msra.mxu0 %v152
    %176 = vmatprep.subr.bf16.mxu0 0
    %177 = vmatpush1.bf16.msra.mxu0 %v153
    %178 = vmatprep.subr.bf16.mxu0 0
    %179 = vmatpush1.bf16.msra.mxu0 0
    %180 = vmatprep.subr.bf16.mxu0 0
    %181 = vmatpush1.bf16.msra.mxu0 0
    %182 = vmatprep.subr.bf16.mxu0 0
    %183 = vmatpush1.bf16.msra.mxu0 0
    %184 = vmatprep.subr.bf16.mxu0 0
    %185 = vmatpush1.bf16.msra.mxu0 0
    %186 = vmatprep.subr.bf16.mxu0 0
    %187 = vmatpush1.bf16.msra.mxu0 0
    %188 = vmatprep.subr.bf16.mxu0 0
    %189 = vmatpush1.bf16.msra.mxu0 0
    %190 = vmatprep.subr.bf16.mxu0 0
    %191 = vmatpush1.bf16.msra.mxu0 0
    %192 = vmatprep.subr.bf16.mxu0 0
    %193 = vmatpush1.bf16.msra.mxu0 0
    %194 = vmatprep.mubr.bf16.mxu0 0
    %195 = vmatmul.mubr.bf16.gmra.mrb[0].mxu0 %v98
    %v196 = vpop.f32.mrb[0].mxu0
    %v197 = vadd.f32 0.0, %v196
    %v198 = vpop.f32.mrb[0].mxu0
    %v199 = vpop.f32.mrb[0].mxu0
    %v200 = vadd.f32 0.0, %v199
    %v201 = vpop.f32.mrb[0].mxu0
    %202 = vmatprep.mubr.bf16.mxu0 0
    %203 = vmatmul.mubr.bf16.gmra.mrb[0].mxu0 %v99
    %v204 = vpop.f32.mrb[0].mxu0
    %v205 = vadd.f32 0.0, %v204
    %v206 = vpop.f32.mrb[0].mxu0
    %v207 = vpop.f32.mrb[0].mxu0
    %v208 = vadd.f32 0.0, %v207
    %v209 = vpop.f32.mrb[0].mxu0
    %210 = vmatprep.mubr.bf16.mxu0 0
    %211 = vmatmul.mubr.bf16.gmra.mrb[0].mxu0 %v100
    %v212 = vpop.f32.mrb[0].mxu0
    %v213 = vadd.f32 0.0, %v212
    %v214 = vpop.f32.mrb[0].mxu0
    %v215 = vpop.f32.mrb[0].mxu0
    %v216 = vadd.f32 0.0, %v215
    %v217 = vpop.f32.mrb[0].mxu0
    %218 = vmatprep.mubr.bf16.mxu0 0
    %219 = vmatmul.mubr.bf16.gmra.mrb[0].mxu0 %v101
    %v220 = vpop.f32.mrb[0].mxu0
    %v221 = vadd.f32 0.0, %v220
    %v222 = vpop.f32.mrb[0].mxu0
    %v223 = vpop.f32.mrb[0].mxu0
    %v224 = vadd.f32 0.0, %v223
    %v225 = vpop.f32.mrb[0].mxu0
    %226 = vmatprep.mubr.bf16.mxu0 0
    %227 = vmatmul.mubr.bf16.gmra.mrb[0].mxu0 %v102
    %v228 = vpop.f32.mrb[0].mxu0
    %v229 = vadd.f32 0.0, %v228
    %v230 = vpop.f32.mrb[0].mxu0
    %v231 = vpop.f32.mrb[0].mxu0
    %v232 = vadd.f32 0.0, %v231
    %v233 = vpop.f32.mrb[0].mxu0
    %234 = vmatprep.mubr.bf16.mxu0 0
    %235 = vmatmul.mubr.bf16.gmra.mrb[0].mxu0 %v103
    %v236 = vpop.f32.mrb[0].mxu0
    %v237 = vadd.f32 0.0, %v236
    %v238 = vpop.f32.mrb[0].mxu0
    %v239 = vpop.f32.mrb[0].mxu0
    %v240 = vadd.f32 0.0, %v239
    %v241 = vpop.f32.mrb[0].mxu0
    %242 = vmatprep.mubr.bf16.mxu0 0
    %243 = vmatmul.mubr.bf16.gmra.mrb[0].mxu0 %v104
    %v244 = vpop.f32.mrb[0].mxu0
    %v245 = vadd.f32 0.0, %v244
    %v246 = vpop.f32.mrb[0].mxu0
    %v247 = vpop.f32.mrb[0].mxu0
    %v248 = vadd.f32 0.0, %v247
    %v249 = vpop.f32.mrb[0].mxu0
    %250 = vmatprep.mubr.bf16.mxu0 0
    %251 = vmatmul.mubr.bf16.gmra.mrb[0].mxu0 %v105
    %v252 = vpop.f32.mrb[0].mxu0
    %v253 = vadd.f32 0.0, %v252
    %v254 = vpop.f32.mrb[0].mxu0
    %v255 = vpop.f32.mrb[0].mxu0
    %v256 = vadd.f32 0.0, %v255
    %v257 = vpop.f32.mrb[0].mxu0
    %258 = vdwg.mxu0
    %v259 = vld [vmem:[%s2] sm:$0xf]
    %v260 = vld [vmem:[%s2 + $0x4] sm:$0xf]
    %v261 = vld [vmem:[%s2 + $0x8] sm:$0xf]
    %v262 = vld [vmem:[%s2 + $0xc] sm:$0xf]
    %v263 = vld [vmem:[%s2 + $0x10] sm:$0xf]
    %v264 = vld [vmem:[%s2 + $0x14] sm:$0xf]
    %v265 = vld [vmem:[%s2 + $0x18] sm:$0xf]
    %v266 = vld [vmem:[%s2 + $0x1c] sm:$0xf]
    %v267 = vld [vmem:[%s2 + $0x20] sm:$0xf]
    %v268 = vld [vmem:[%s2 + $0x24] sm:$0xf]
    %v269 = vld [vmem:[%s2 + $0x28] sm:$0xf]
    %v270 = vld [vmem:[%s2 + $0x2c] sm:$0xf]
    %v271 = vld [vmem:[%s2 + $0x30] sm:$0xf]
    %v272 = vld [vmem:[%s2 + $0x34] sm:$0xf]
    %v273 = vld [vmem:[%s2 + $0x38] sm:$0xf]
    %v274 = vld [vmem:[%s2 + $0x3c] sm:$0xf]
    %v275 = vpack.c.bf16 %v200, %v197
    %v276 = vpack.c.bf16 %v208, %v205
    %v277 = vpack.c.bf16 %v216, %v213
    %v278 = vpack.c.bf16 %v224, %v221
    %v279 = vpack.c.bf16 %v232, %v229
    %v280 = vpack.c.bf16 %v240, %v237
    %v281 = vpack.c.bf16 %v248, %v245
    %v282 = vpack.c.bf16 %v256, %v253
    %v299 = vunpack.c.l.b16 %v259
    %v300 = vunpack.c.l.b16 %v260
    %v301 = vunpack.c.l.b16 %v261
    %v302 = vunpack.c.l.b16 %v262
    %v303 = vunpack.c.l.b16 %v263
    %v304 = vunpack.c.l.b16 %v264
    %v305 = vunpack.c.l.b16 %v265
    %v306 = vunpack.c.l.b16 %v266
    %v307 = vunpack.c.l.b16 %v267
    %v308 = vunpack.c.l.b16 %v268
    %v309 = vunpack.c.l.b16 %v269
    %v310 = vunpack.c.l.b16 %v270
    %v311 = vunpack.c.l.b16 %v271
    %v312 = vunpack.c.l.b16 %v272
    %v313 = vunpack.c.l.b16 %v273
    %v314 = vunpack.c.l.b16 %v274
    %v315 = vpack.c.b16 %v300, %v299
    %v316 = vpack.c.b16 %v302, %v301
    %v317 = vpack.c.b16 %v304, %v303
    %v318 = vpack.c.b16 %v306, %v305
    %v319 = vpack.c.b16 %v308, %v307
    %v320 = vpack.c.b16 %v310, %v309
    %v321 = vpack.c.b16 %v312, %v311
    %v322 = vpack.c.b16 %v314, %v313
    %331 = vmatprep.subr.bf16.mxu0 0
    %332 = vmatpush1.bf16.msra.mxu0 %v275
    %333 = vmatprep.subr.bf16.mxu0 0
    %334 = vmatpush1.bf16.msra.mxu0 %v276
    %335 = vmatprep.subr.bf16.mxu0 0
    %336 = vmatpush1.bf16.msra.mxu0 %v277
    %337 = vmatprep.subr.bf16.mxu0 0
    %338 = vmatpush1.bf16.msra.mxu0 %v278
    %339 = vmatprep.subr.bf16.mxu0 0
    %340 = vmatpush1.bf16.msra.mxu0 %v279
    %341 = vmatprep.subr.bf16.mxu0 0
    %342 = vmatpush1.bf16.msra.mxu0 %v280
    %343 = vmatprep.subr.bf16.mxu0 0
    %344 = vmatpush1.bf16.msra.mxu0 %v281
    %345 = vmatprep.subr.bf16.mxu0 0
    %346 = vmatpush1.bf16.msra.mxu0 %v282
    %347 = vmatprep.subr.bf16.mxu0 0
    %348 = vmatpush1.bf16.msra.mxu0 0
    %349 = vmatprep.subr.bf16.mxu0 0
    %350 = vmatpush1.bf16.msra.mxu0 0
    %351 = vmatprep.subr.bf16.mxu0 0
    %352 = vmatpush1.bf16.msra.mxu0 0
    %353 = vmatprep.subr.bf16.mxu0 0
    %354 = vmatpush1.bf16.msra.mxu0 0
    %355 = vmatprep.subr.bf16.mxu0 0
    %356 = vmatpush1.bf16.msra.mxu0 0
    %357 = vmatprep.subr.bf16.mxu0 0
    %358 = vmatpush1.bf16.msra.mxu0 0
    %359 = vmatprep.subr.bf16.mxu0 0
    %360 = vmatpush1.bf16.msra.mxu0 0
    %361 = vmatprep.subr.bf16.mxu0 0
    %362 = vmatpush1.bf16.msra.mxu0 0
    %363 = vmatprep.mubr.bf16.mxu0 0
    %364 = vmatmul.mubr.bf16.gmra.mrb[0].mxu0 %v315
    %v365 = vpop.f32.mrb[0].mxu0
    %v366 = vadd.f32 0.0, %v365
    %v367 = vpop.f32.mrb[0].mxu0
    %v368 = vpop.f32.mrb[0].mxu0
    %v369 = vadd.f32 0.0, %v368
    %v370 = vpop.f32.mrb[0].mxu0
    %371 = vmatprep.mubr.bf16.mxu0 0
    %372 = vmatmul.mubr.bf16.gmra.mrb[0].mxu0 %v316
    %v373 = vpop.f32.mrb[0].mxu0
    %v374 = vadd.f32 0.0, %v373
    %v375 = vpop.f32.mrb[0].mxu0
    %v376 = vpop.f32.mrb[0].mxu0
    %v377 = vadd.f32 0.0, %v376
    %v378 = vpop.f32.mrb[0].mxu0
    %379 = vmatprep.mubr.bf16.mxu0 0
    %380 = vmatmul.mubr.bf16.gmra.mrb[0].mxu0 %v317
    %v381 = vpop.f32.mrb[0].mxu0
    %v382 = vadd.f32 0.0, %v381
    %v383 = vpop.f32.mrb[0].mxu0
    %v384 = vpop.f32.mrb[0].mxu0
    %v385 = vadd.f32 0.0, %v384
    %v386 = vpop.f32.mrb[0].mxu0
    %387 = vmatprep.mubr.bf16.mxu0 0
    %388 = vmatmul.mubr.bf16.gmra.mrb[0].mxu0 %v318
    %v389 = vpop.f32.mrb[0].mxu0
    %v390 = vadd.f32 0.0, %v389
    %v391 = vpop.f32.mrb[0].mxu0
    %v392 = vpop.f32.mrb[0].mxu0
    %v393 = vadd.f32 0.0, %v392
    %v394 = vpop.f32.mrb[0].mxu0
    %395 = vmatprep.mubr.bf16.mxu0 0
    %396 = vmatmul.mubr.bf16.gmra.mrb[0].mxu0 %v319
    %v397 = vpop.f32.mrb[0].mxu0
    %v398 = vadd.f32 0.0, %v397
    %v399 = vpop.f32.mrb[0].mxu0
    %v400 = vpop.f32.mrb[0].mxu0
    %v401 = vadd.f32 0.0, %v400
    %v402 = vpop.f32.mrb[0].mxu0
    %403 = vmatprep.mubr.bf16.mxu0 0
    %404 = vmatmul.mubr.bf16.gmra.mrb[0].mxu0 %v320
    %v405 = vpop.f32.mrb[0].mxu0
    %v406 = vadd.f32 0.0, %v405
    %v407 = vpop.f32.mrb[0].mxu0
    %v408 = vpop.f32.mrb[0].mxu0
    %v409 = vadd.f32 0.0, %v408
    %v410 = vpop.f32.mrb[0].mxu0
    %411 = vmatprep.mubr.bf16.mxu0 0
    %412 = vmatmul.mubr.bf16.gmra.mrb[0].mxu0 %v321
    %v413 = vpop.f32.mrb[0].mxu0
    %v414 = vadd.f32 0.0, %v413
    %v415 = vpop.f32.mrb[0].mxu0
    %v416 = vpop.f32.mrb[0].mxu0
    %v417 = vadd.f32 0.0, %v416
    %v418 = vpop.f32.mrb[0].mxu0
    %419 = vmatprep.mubr.bf16.mxu0 0
    %420 = vmatmul.mubr.bf16.gmra.mrb[0].mxu0 %v322
    %v421 = vpop.f32.mrb[0].mxu0
    %v422 = vadd.f32 0.0, %v421
    %v423 = vpop.f32.mrb[0].mxu0
    %v424 = vpop.f32.mrb[0].mxu0
    %v425 = vadd.f32 0.0, %v424
    %v426 = vpop.f32.mrb[0].mxu0
    %427 = vdwg.mxu0
    %p428 = scmp.eq.s32.totalorder 0, 0
    // Predicated region
    $region18: #{aneci_forward_padded.2} parent=1 // pred_check
      %p429 = pneg %p428
    $region19: #{aneci_forward_padded.2} parent=1 // pred_check_branch
      %431 = sbr.rel (%p429) target = $region21
    $region20: #{aneci_forward_padded.2} parent=1 // pred_region
      %432 = vst [vmem:[#allocation2] sm:$0xff] %v366
      %433 = vst [vmem:[#allocation2 + $0x8] sm:$0xff] %v369
      %434 = vst [vmem:[#allocation2 + $0x10] sm:$0xff] %v374
      %435 = vst [vmem:[#allocation2 + $0x18] sm:$0xff] %v377
      %436 = vst [vmem:[#allocation2 + $0x20] sm:$0xff] %v382
      %437 = vst [vmem:[#allocation2 + $0x28] sm:$0xff] %v385
      %438 = vst [vmem:[#allocation2 + $0x30] sm:$0xff] %v390
      %439 = vst [vmem:[#allocation2 + $0x38] sm:$0xff] %v393
      %440 = vst [vmem:[#allocation2 + $0x40] sm:$0xff] %v398
      %441 = vst [vmem:[#allocation2 + $0x48] sm:$0xff] %v401
      %442 = vst [vmem:[#allocation2 + $0x50] sm:$0xff] %v406
      %443 = vst [vmem:[#allocation2 + $0x58] sm:$0xff] %v409
      %444 = vst [vmem:[#allocation2 + $0x60] sm:$0xff] %v414
      %445 = vst [vmem:[#allocation2 + $0x68] sm:$0xff] %v417
      %446 = vst [vmem:[#allocation2 + $0x70] sm:$0xff] %v422
      %447 = vst [vmem:[#allocation2 + $0x78] sm:$0xff] %v425
    $region21: #{aneci_forward_padded.2} parent=1 // pred_fallthru
      _
    %p448 = scmp.ne.s32.totalorder 0, 0
    // Predicated region
    $region22: #{aneci_forward_padded.2} parent=1 // pred_check
      %p449 = pneg %p448
    $region23: #{aneci_forward_padded.2} parent=1 // pred_check_branch
      %451 = sbr.rel (%p449) target = $region25
    $region24: #{aneci_forward_padded.2} parent=1 // pred_region
      %v452 = vld [vmem:[#allocation2] sm:$0xff]
      %v453 = vld [vmem:[#allocation2 + $0x8] sm:$0xff]
      %v454 = vld [vmem:[#allocation2 + $0x10] sm:$0xff]
      %v455 = vld [vmem:[#allocation2 + $0x18] sm:$0xff]
      %v456 = vld [vmem:[#allocation2 + $0x20] sm:$0xff]
      %v457 = vld [vmem:[#allocation2 + $0x28] sm:$0xff]
      %v458 = vld [vmem:[#allocation2 + $0x30] sm:$0xff]
      %v459 = vld [vmem:[#allocation2 + $0x38] sm:$0xff]
      %v460 = vld [vmem:[#allocation2 + $0x40] sm:$0xff]
      %v461 = vld [vmem:[#allocation2 + $0x48] sm:$0xff]
      %v462 = vld [vmem:[#allocation2 + $0x50] sm:$0xff]
      %v463 = vld [vmem:[#allocation2 + $0x58] sm:$0xff]
      %v464 = vld [vmem:[#allocation2 + $0x60] sm:$0xff]
      %v465 = vld [vmem:[#allocation2 + $0x68] sm:$0xff]
      %v466 = vld [vmem:[#allocation2 + $0x70] sm:$0xff]
      %v467 = vld [vmem:[#allocation2 + $0x78] sm:$0xff]
      %v468 = vadd.f32 %v452, %v366
      %v469 = vadd.f32 %v453, %v369
      %v470 = vadd.f32 %v454, %v374
      %v471 = vadd.f32 %v455, %v377
      %v472 = vadd.f32 %v456, %v382
      %v473 = vadd.f32 %v457, %v385
      %v474 = vadd.f32 %v458, %v390
      %v475 = vadd.f32 %v459, %v393
      %v476 = vadd.f32 %v460, %v398
      %v477 = vadd.f32 %v461, %v401
      %v478 = vadd.f32 %v462, %v406
      %v479 = vadd.f32 %v463, %v409
      %v480 = vadd.f32 %v464, %v414
      %v481 = vadd.f32 %v465, %v417
      %v482 = vadd.f32 %v466, %v422
      %v483 = vadd.f32 %v467, %v425
      %484 = vst [vmem:[#allocation2] sm:$0xff] %v468
      %485 = vst [vmem:[#allocation2 + $0x8] sm:$0xff] %v469
      %486 = vst [vmem:[#allocation2 + $0x10] sm:$0xff] %v470
      %487 = vst [vmem:[#allocation2 + $0x18] sm:$0xff] %v471
      %488 = vst [vmem:[#allocation2 + $0x20] sm:$0xff] %v472
      %489 = vst [vmem:[#allocation2 + $0x28] sm:$0xff] %v473
      %490 = vst [vmem:[#allocation2 + $0x30] sm:$0xff] %v474
      %491 = vst [vmem:[#allocation2 + $0x38] sm:$0xff] %v475
      %492 = vst [vmem:[#allocation2 + $0x40] sm:$0xff] %v476
      %493 = vst [vmem:[#allocation2 + $0x48] sm:$0xff] %v477
      %494 = vst [vmem:[#allocation2 + $0x50] sm:$0xff] %v478
      %495 = vst [vmem:[#allocation2 + $0x58] sm:$0xff] %v479
      %496 = vst [vmem:[#allocation2 + $0x60] sm:$0xff] %v480
      %497 = vst [vmem:[#allocation2 + $0x68] sm:$0xff] %v481
      %498 = vst [vmem:[#allocation2 + $0x70] sm:$0xff] %v482
      %499 = vst [vmem:[#allocation2 + $0x78] sm:$0xff] %v483
    $region25: #{aneci_forward_padded.2} parent=1 // pred_fallthru
      _
    // Predicated region
    $region26: #{aneci_forward_padded.2} parent=1 // pred_check
      %p500 = pneg %p428
    $region27: #{aneci_forward_padded.2} parent=1 // pred_check_branch
      %502 = sbr.rel (%p500) target = $region29
    $region28: #{aneci_forward_padded.2} parent=1 // pred_region
      %v503 = vld [vmem:[#allocation2] sm:$0xff]
      %v504 = vld [vmem:[#allocation2 + $0x8] sm:$0xff]
      %v505 = vld [vmem:[#allocation2 + $0x10] sm:$0xff]
      %v506 = vld [vmem:[#allocation2 + $0x18] sm:$0xff]
      %v507 = vld [vmem:[#allocation2 + $0x20] sm:$0xff]
      %v508 = vld [vmem:[#allocation2 + $0x28] sm:$0xff]
      %v509 = vld [vmem:[#allocation2 + $0x30] sm:$0xff]
      %v510 = vld [vmem:[#allocation2 + $0x38] sm:$0xff]
      %v511 = vld [vmem:[#allocation2 + $0x40] sm:$0xff]
      %v512 = vld [vmem:[#allocation2 + $0x48] sm:$0xff]
      %v513 = vld [vmem:[#allocation2 + $0x50] sm:$0xff]
      %v514 = vld [vmem:[#allocation2 + $0x58] sm:$0xff]
      %v515 = vld [vmem:[#allocation2 + $0x60] sm:$0xff]
      %v516 = vld [vmem:[#allocation2 + $0x68] sm:$0xff]
      %v517 = vld [vmem:[#allocation2 + $0x70] sm:$0xff]
      %v518 = vld [vmem:[#allocation2 + $0x78] sm:$0xff]
      %vm519 = vcmp.gt.f32.partialorder %v503, 0.0
      %vm520 = vcmp.gt.f32.partialorder %v504, 0.0
      %vm521 = vcmp.gt.f32.partialorder %v505, 0.0
      %vm522 = vcmp.gt.f32.partialorder %v506, 0.0
      %vm523 = vcmp.gt.f32.partialorder %v507, 0.0
      %vm524 = vcmp.gt.f32.partialorder %v508, 0.0
      %vm525 = vcmp.gt.f32.partialorder %v509, 0.0
      %vm526 = vcmp.gt.f32.partialorder %v510, 0.0
      %vm527 = vcmp.gt.f32.partialorder %v511, 0.0
      %vm528 = vcmp.gt.f32.partialorder %v512, 0.0
      %vm529 = vcmp.gt.f32.partialorder %v513, 0.0
      %vm530 = vcmp.gt.f32.partialorder %v514, 0.0
      %vm531 = vcmp.gt.f32.partialorder %v515, 0.0
      %vm532 = vcmp.gt.f32.partialorder %v516, 0.0
      %vm533 = vcmp.gt.f32.partialorder %v517, 0.0
      %vm534 = vcmp.gt.f32.partialorder %v518, 0.0
      %v535 = vmul.f32 %v503, 0.01
      %v536 = vmul.f32 %v504, 0.01
      %v537 = vmul.f32 %v505, 0.01
      %v538 = vmul.f32 %v506, 0.01
      %v539 = vmul.f32 %v507, 0.01
      %v540 = vmul.f32 %v508, 0.01
      %v541 = vmul.f32 %v509, 0.01
      %v542 = vmul.f32 %v510, 0.01
      %v543 = vmul.f32 %v511, 0.01
      %v544 = vmul.f32 %v512, 0.01
      %v545 = vmul.f32 %v513, 0.01
      %v546 = vmul.f32 %v514, 0.01
      %v547 = vmul.f32 %v515, 0.01
      %v548 = vmul.f32 %v516, 0.01
      %v549 = vmul.f32 %v517, 0.01
      %v550 = vmul.f32 %v518, 0.01
      %v551 = vsel %vm519, %v503, %v535
      %v552 = vsel %vm520, %v504, %v536
      %v553 = vsel %vm521, %v505, %v537
      %v554 = vsel %vm522, %v506, %v538
      %v555 = vsel %vm523, %v507, %v539
      %v556 = vsel %vm524, %v508, %v540
      %v557 = vsel %vm525, %v509, %v541
      %v558 = vsel %vm526, %v510, %v542
      %v559 = vsel %vm527, %v511, %v543
      %v560 = vsel %vm528, %v512, %v544
      %v561 = vsel %vm529, %v513, %v545
      %v562 = vsel %vm530, %v514, %v546
      %v563 = vsel %vm531, %v515, %v547
      %v564 = vsel %vm532, %v516, %v548
      %v565 = vsel %vm533, %v517, %v549
      %v566 = vsel %vm534, %v518, %v550
      %v567 = vpack.c.bf16 %v552, %v551
      %v568 = vpack.c.bf16 %v554, %v553
      %v569 = vpack.c.bf16 %v556, %v555
      %v570 = vpack.c.bf16 %v558, %v557
      %v571 = vpack.c.bf16 %v560, %v559
      %v572 = vpack.c.bf16 %v562, %v561
      %v573 = vpack.c.bf16 %v564, %v563
      %v574 = vpack.c.bf16 %v566, %v565
      %v583 = vunpack.c.l.b16 %v567
      %v584 = vunpack.c.h.b16 %v567
      %v585 = vunpack.c.l.b16 %v568
      %v586 = vunpack.c.h.b16 %v568
      %v587 = vunpack.c.l.b16 %v569
      %v588 = vunpack.c.h.b16 %v569
      %v589 = vunpack.c.l.b16 %v570
      %v590 = vunpack.c.h.b16 %v570
      %v591 = vunpack.c.l.b16 %v571
      %v592 = vunpack.c.h.b16 %v571
      %v593 = vunpack.c.l.b16 %v572
      %v594 = vunpack.c.h.b16 %v572
      %v595 = vunpack.c.l.b16 %v573
      %v596 = vunpack.c.h.b16 %v573
      %v597 = vunpack.c.l.b16 %v574
      %v598 = vunpack.c.h.b16 %v574
      %v599 = vpack.c.b16 %v583, %v583
      %v600 = vpack.c.b16 %v584, %v584
      %v601 = vpack.c.b16 %v585, %v585
      %v602 = vpack.c.b16 %v586, %v586
      %v603 = vpack.c.b16 %v587, %v587
      %v604 = vpack.c.b16 %v588, %v588
      %v605 = vpack.c.b16 %v589, %v589
      %v606 = vpack.c.b16 %v590, %v590
      %v607 = vpack.c.b16 %v591, %v591
      %v608 = vpack.c.b16 %v592, %v592
      %v609 = vpack.c.b16 %v593, %v593
      %v610 = vpack.c.b16 %v594, %v594
      %v611 = vpack.c.b16 %v595, %v595
      %v612 = vpack.c.b16 %v596, %v596
      %v613 = vpack.c.b16 %v597, %v597
      %v614 = vpack.c.b16 %v598, %v598
      %631 = vst [vmem:[%s3] sm:$0xf] %v599
      %632 = vst [vmem:[%s3 + $0x4] sm:$0xf] %v600
      %633 = vst [vmem:[%s3 + $0x8] sm:$0xf] %v601
      %634 = vst [vmem:[%s3 + $0xc] sm:$0xf] %v602
      %635 = vst [vmem:[%s3 + $0x10] sm:$0xf] %v603
      %636 = vst [vmem:[%s3 + $0x14] sm:$0xf] %v604
      %637 = vst [vmem:[%s3 + $0x18] sm:$0xf] %v605
      %638 = vst [vmem:[%s3 + $0x1c] sm:$0xf] %v606
      %639 = vst [vmem:[%s3 + $0x20] sm:$0xf] %v607
      %640 = vst [vmem:[%s3 + $0x24] sm:$0xf] %v608
      %641 = vst [vmem:[%s3 + $0x28] sm:$0xf] %v609
      %642 = vst [vmem:[%s3 + $0x2c] sm:$0xf] %v610
      %643 = vst [vmem:[%s3 + $0x30] sm:$0xf] %v611
      %644 = vst [vmem:[%s3 + $0x34] sm:$0xf] %v612
      %645 = vst [vmem:[%s3 + $0x38] sm:$0xf] %v613
      %646 = vst [vmem:[%s3 + $0x3c] sm:$0xf] %v614
    $region29: #{aneci_forward_padded.2} parent=1 // pred_fallthru
      _
    // Predicated region
    $region30: #{aneci_forward_padded.2} parent=1 // pred_check
      _
    $region31: #{aneci_forward_padded.2} parent=1 // pred_check_branch
      %648 = sbr.rel (0) target = $region33
    $region32: #{aneci_forward_padded.2} parent=1 // pred_region
      _
    $region33: #{aneci_forward_padded.2} parent=1 // pred_fallthru
      _
    // Predicated region
    $region34: #{aneci_forward_padded.2} parent=1 // pred_check
      _
    $region35: #{aneci_forward_padded.2} parent=1 // pred_check_branch
      %650 = sbr.rel (0) target = $region37
    $region36: #{aneci_forward_padded.2} parent=1 // pred_region
      _
    $region37: #{aneci_forward_padded.2} parent=1 // pred_fallthru
      _
    %651 = vsyncpa [#allocation4], 1

// kernel: aneci_forward_padded.3
$region0: #{aneci_forward_padded.3}
  #allocation0 [shape = 'u32[]', space=smem, size = 0x4, offset = 0x4, fixed_abs, tag = 'smem constant byte address 0x4 - core index']
  #allocation1 [shape = 'u32[144,128]{1,0:T(1,128)}', space=vmem, size = 0x12000, scoped, tag = 'internal scratch']
  #allocation2 [shape = 'f32[128,128]{1,0:T(8,128)}', space=vmem, size = 0x10000, scoped, tag = 'scratch operand']
  %s0 = inlined_call_operand.vmem [shape: bf16[128,128], index: 0, kind: input, shape index: {}]
  %s1 = inlined_call_operand.vmem [shape: bf16[128,128], index: 1, kind: input, shape index: {}]
  %s2 = inlined_call_operand.vmem [shape: bf16[128,128], index: 2, kind: input, shape index: {}]
  %s3 = inlined_call_operand.vmem [shape: f32[128,128], index: 3, kind: output, shape index: {0}]
  %s4 = inlined_call_operand.vmem [shape: f32[128,128], index: 4, kind: output, shape index: {1}]
  %5 = xla_tuple %s3, %s4
  %s6 = sld [smem:[#allocation0]]
  $region42: #{aneci_forward_padded.3} parent=0
    _
  %s8 = ssub.s32 1, %s6
  %s9 = scalar_select 0, %s8, %s6
  // Predicated region
  $region2: #{aneci_forward_padded.3} parent=0 // pred_check
    _
  $region3: #{aneci_forward_padded.3} parent=0 // pred_check_branch
    %11 = sbr.rel (0) target = $region5
  $region4: #{aneci_forward_padded.3} parent=0 // pred_region
    _
  $region5: #{aneci_forward_padded.3} parent=0 // pred_fallthru
    _
  // Predicated region
  $region6: #{aneci_forward_padded.3} parent=0 // pred_check
    _
  $region7: #{aneci_forward_padded.3} parent=0 // pred_check_branch
    %13 = sbr.rel (0) target = $region9
  $region8: #{aneci_forward_padded.3} parent=0 // pred_region
    _
  $region9: #{aneci_forward_padded.3} parent=0 // pred_fallthru
    _
  // Predicated region
  $region10: #{aneci_forward_padded.3} parent=0 // pred_check
    _
  $region11: #{aneci_forward_padded.3} parent=0 // pred_check_branch
    %15 = sbr.rel (0) target = $region13
  $region12: #{aneci_forward_padded.3} parent=0 // pred_region
    _
  $region13: #{aneci_forward_padded.3} parent=0 // pred_fallthru
    _
  %s17 = smul.u32 0, 128
  %s18 = sshra.s32 %s17, 3
  %s19 = sand.u32 %s17, 7
  %s20 = smul.addr %s18, 4
  %s21 = scalar_lea.vmem %s0, %s20
  %v22 = vld [vmem:[%s21] sm:$0xf]
  %v23 = vld [vmem:[%s21 + $0x4] sm:$0xf]
  %v24 = vld [vmem:[%s21 + $0x8] sm:$0xf]
  %v25 = vld [vmem:[%s21 + $0xc] sm:$0xf]
  %v26 = vld [vmem:[%s21 + $0x10] sm:$0xf]
  %v27 = vld [vmem:[%s21 + $0x14] sm:$0xf]
  %v28 = vld [vmem:[%s21 + $0x18] sm:$0xf]
  %v29 = vld [vmem:[%s21 + $0x1c] sm:$0xf]
  %v30 = vld [vmem:[%s21 + $0x20] sm:$0xf]
  %v31 = vld [vmem:[%s21 + $0x24] sm:$0xf]
  %v32 = vld [vmem:[%s21 + $0x28] sm:$0xf]
  %v33 = vld [vmem:[%s21 + $0x2c] sm:$0xf]
  %v34 = vld [vmem:[%s21 + $0x30] sm:$0xf]
  %v35 = vld [vmem:[%s21 + $0x34] sm:$0xf]
  %v36 = vld [vmem:[%s21 + $0x38] sm:$0xf]
  %v37 = vld [vmem:[%s21 + $0x3c] sm:$0xf]
  %v38 = vld [vmem:[%s1] sm:$0xf]
  %v39 = vld [vmem:[%s1 + $0x4] sm:$0xf]
  %v40 = vld [vmem:[%s1 + $0x8] sm:$0xf]
  %v41 = vld [vmem:[%s1 + $0xc] sm:$0xf]
  %v42 = vld [vmem:[%s1 + $0x10] sm:$0xf]
  %v43 = vld [vmem:[%s1 + $0x14] sm:$0xf]
  %v44 = vld [vmem:[%s1 + $0x18] sm:$0xf]
  %v45 = vld [vmem:[%s1 + $0x1c] sm:$0xf]
  %v46 = vld [vmem:[%s1 + $0x20] sm:$0xf]
  %v47 = vld [vmem:[%s1 + $0x24] sm:$0xf]
  %v48 = vld [vmem:[%s1 + $0x28] sm:$0xf]
  %v49 = vld [vmem:[%s1 + $0x2c] sm:$0xf]
  %v50 = vld [vmem:[%s1 + $0x30] sm:$0xf]
  %v51 = vld [vmem:[%s1 + $0x34] sm:$0xf]
  %v52 = vld [vmem:[%s1 + $0x38] sm:$0xf]
  %v53 = vld [vmem:[%s1 + $0x3c] sm:$0xf]
  %v70 = vunpack.c.l.b16 %v22
  %v71 = vunpack.c.l.b16 %v23
  %v72 = vunpack.c.l.b16 %v24
  %v73 = vunpack.c.l.b16 %v25
  %v74 = vunpack.c.l.b16 %v26
  %v75 = vunpack.c.l.b16 %v27
  %v76 = vunpack.c.l.b16 %v28
  %v77 = vunpack.c.l.b16 %v29
  %v78 = vunpack.c.l.b16 %v30
  %v79 = vunpack.c.l.b16 %v31
  %v80 = vunpack.c.l.b16 %v32
  %v81 = vunpack.c.l.b16 %v33
  %v82 = vunpack.c.l.b16 %v34
  %v83 = vunpack.c.l.b16 %v35
  %v84 = vunpack.c.l.b16 %v36
  %v85 = vunpack.c.l.b16 %v37
  %v86 = vpack.c.b16 %v71, %v70
  %v87 = vpack.c.b16 %v73, %v72
  %v88 = vpack.c.b16 %v75, %v74
  %v89 = vpack.c.b16 %v77, %v76
  %v90 = vpack.c.b16 %v79, %v78
  %v91 = vpack.c.b16 %v81, %v80
  %v92 = vpack.c.b16 %v83, %v82
  %v93 = vpack.c.b16 %v85, %v84
  %v118 = vunpack.c.l.b16 %v38
  %v119 = vunpack.c.l.b16 %v39
  %v120 = vunpack.c.l.b16 %v40
  %v121 = vunpack.c.l.b16 %v41
  %v122 = vunpack.c.l.b16 %v42
  %v123 = vunpack.c.l.b16 %v43
  %v124 = vunpack.c.l.b16 %v44
  %v125 = vunpack.c.l.b16 %v45
  %v126 = vunpack.c.l.b16 %v46
  %v127 = vunpack.c.l.b16 %v47
  %v128 = vunpack.c.l.b16 %v48
  %v129 = vunpack.c.l.b16 %v49
  %v130 = vunpack.c.l.b16 %v50
  %v131 = vunpack.c.l.b16 %v51
  %v132 = vunpack.c.l.b16 %v52
  %v133 = vunpack.c.l.b16 %v53
  %v134 = vpack.c.b16 %v119, %v118
  %v135 = vpack.c.b16 %v121, %v120
  %v136 = vpack.c.b16 %v123, %v122
  %v137 = vpack.c.b16 %v125, %v124
  %v138 = vpack.c.b16 %v127, %v126
  %v139 = vpack.c.b16 %v129, %v128
  %v140 = vpack.c.b16 %v131, %v130
  %v141 = vpack.c.b16 %v133, %v132
  %150 = vmatprep.subr.bf16.mxu0 0
  %151 = vmatpush1.bf16.msra.mxu0 %v134
  %152 = vmatprep.subr.bf16.mxu0 0
  %153 = vmatpush1.bf16.msra.mxu0 %v135
  %154 = vmatprep.subr.bf16.mxu0 0
  %155 = vmatpush1.bf16.msra.mxu0 %v136
  %156 = vmatprep.subr.bf16.mxu0 0
  %157 = vmatpush1.bf16.msra.mxu0 %v137
  %158 = vmatprep.subr.bf16.mxu0 0
  %159 = vmatpush1.bf16.msra.mxu0 %v138
  %160 = vmatprep.subr.bf16.mxu0 0
  %161 = vmatpush1.bf16.msra.mxu0 %v139
  %162 = vmatprep.subr.bf16.mxu0 0
  %163 = vmatpush1.bf16.msra.mxu0 %v140
  %164 = vmatprep.subr.bf16.mxu0 0
  %165 = vmatpush1.bf16.msra.mxu0 %v141
  %166 = vmatprep.subr.bf16.mxu0 0
  %167 = vmatpush1.bf16.msra.mxu0 0
  %168 = vmatprep.subr.bf16.mxu0 0
  %169 = vmatpush1.bf16.msra.mxu0 0
  %170 = vmatprep.subr.bf16.mxu0 0
  %171 = vmatpush1.bf16.msra.mxu0 0
  %172 = vmatprep.subr.bf16.mxu0 0
  %173 = vmatpush1.bf16.msra.mxu0 0
  %174 = vmatprep.subr.bf16.mxu0 0
  %175 = vmatpush1.bf16.msra.mxu0 0
  %176 = vmatprep.subr.bf16.mxu0 0
  %177 = vmatpush1.bf16.msra.mxu0 0
  %178 = vmatprep.subr.bf16.mxu0 0
  %179 = vmatpush1.bf16.msra.mxu0 0
  %180 = vmatprep.subr.bf16.mxu0 0
  %181 = vmatpush1.bf16.msra.mxu0 0
  %182 = vmatprep.mubr.bf16.mxu0 0
  %183 = vmatmul.mubr.bf16.gmra.mrb[0].mxu0 %v86
  %v184 = vpop.f32.mrb[0].mxu0
  %v185 = vadd.f32 0.0, %v184
  %v186 = vpop.f32.mrb[0].mxu0
  %v187 = vpop.f32.mrb[0].mxu0
  %v188 = vadd.f32 0.0, %v187
  %v189 = vpop.f32.mrb[0].mxu0
  %190 = vmatprep.mubr.bf16.mxu0 0
  %191 = vmatmul.mubr.bf16.gmra.mrb[0].mxu0 %v87
  %v192 = vpop.f32.mrb[0].mxu0
  %v193 = vadd.f32 0.0, %v192
  %v194 = vpop.f32.mrb[0].mxu0
  %v195 = vpop.f32.mrb[0].mxu0
  %v196 = vadd.f32 0.0, %v195
  %v197 = vpop.f32.mrb[0].mxu0
  %198 = vmatprep.mubr.bf16.mxu0 0
  %199 = vmatmul.mubr.bf16.gmra.mrb[0].mxu0 %v88
  %v200 = vpop.f32.mrb[0].mxu0
  %v201 = vadd.f32 0.0, %v200
  %v202 = vpop.f32.mrb[0].mxu0
  %v203 = vpop.f32.mrb[0].mxu0
  %v204 = vadd.f32 0.0, %v203
  %v205 = vpop.f32.mrb[0].mxu0
  %206 = vmatprep.mubr.bf16.mxu0 0
  %207 = vmatmul.mubr.bf16.gmra.mrb[0].mxu0 %v89
  %v208 = vpop.f32.mrb[0].mxu0
  %v209 = vadd.f32 0.0, %v208
  %v210 = vpop.f32.mrb[0].mxu0
  %v211 = vpop.f32.mrb[0].mxu0
  %v212 = vadd.f32 0.0, %v211
  %v213 = vpop.f32.mrb[0].mxu0
  %214 = vmatprep.mubr.bf16.mxu0 0
  %215 = vmatmul.mubr.bf16.gmra.mrb[0].mxu0 %v90
  %v216 = vpop.f32.mrb[0].mxu0
  %v217 = vadd.f32 0.0, %v216
  %v218 = vpop.f32.mrb[0].mxu0
  %v219 = vpop.f32.mrb[0].mxu0
  %v220 = vadd.f32 0.0, %v219
  %v221 = vpop.f32.mrb[0].mxu0
  %222 = vmatprep.mubr.bf16.mxu0 0
  %223 = vmatmul.mubr.bf16.gmra.mrb[0].mxu0 %v91
  %v224 = vpop.f32.mrb[0].mxu0
  %v225 = vadd.f32 0.0, %v224
  %v226 = vpop.f32.mrb[0].mxu0
  %v227 = vpop.f32.mrb[0].mxu0
  %v228 = vadd.f32 0.0, %v227
  %v229 = vpop.f32.mrb[0].mxu0
  %230 = vmatprep.mubr.bf16.mxu0 0
  %231 = vmatmul.mubr.bf16.gmra.mrb[0].mxu0 %v92
  %v232 = vpop.f32.mrb[0].mxu0
  %v233 = vadd.f32 0.0, %v232
  %v234 = vpop.f32.mrb[0].mxu0
  %v235 = vpop.f32.mrb[0].mxu0
  %v236 = vadd.f32 0.0, %v235
  %v237 = vpop.f32.mrb[0].mxu0
  %238 = vmatprep.mubr.bf16.mxu0 0
  %239 = vmatmul.mubr.bf16.gmra.mrb[0].mxu0 %v93
  %v240 = vpop.f32.mrb[0].mxu0
  %v241 = vadd.f32 0.0, %v240
  %v242 = vpop.f32.mrb[0].mxu0
  %v243 = vpop.f32.mrb[0].mxu0
  %v244 = vadd.f32 0.0, %v243
  %v245 = vpop.f32.mrb[0].mxu0
  %246 = vdwg.mxu0
  %v247 = vld [vmem:[%s2] sm:$0xf]
  %v248 = vld [vmem:[%s2 + $0x4] sm:$0xf]
  %v249 = vld [vmem:[%s2 + $0x8] sm:$0xf]
  %v250 = vld [vmem:[%s2 + $0xc] sm:$0xf]
  %v251 = vld [vmem:[%s2 + $0x10] sm:$0xf]
  %v252 = vld [vmem:[%s2 + $0x14] sm:$0xf]
  %v253 = vld [vmem:[%s2 + $0x18] sm:$0xf]
  %v254 = vld [vmem:[%s2 + $0x1c] sm:$0xf]
  %v255 = vld [vmem:[%s2 + $0x20] sm:$0xf]
  %v256 = vld [vmem:[%s2 + $0x24] sm:$0xf]
  %v257 = vld [vmem:[%s2 + $0x28] sm:$0xf]
  %v258 = vld [vmem:[%s2 + $0x2c] sm:$0xf]
  %v259 = vld [vmem:[%s2 + $0x30] sm:$0xf]
  %v260 = vld [vmem:[%s2 + $0x34] sm:$0xf]
  %v261 = vld [vmem:[%s2 + $0x38] sm:$0xf]
  %v262 = vld [vmem:[%s2 + $0x3c] sm:$0xf]
  %v263 = vpack.c.bf16 %v188, %v185
  %v264 = vpack.c.bf16 %v196, %v193
  %v265 = vpack.c.bf16 %v204, %v201
  %v266 = vpack.c.bf16 %v212, %v209
  %v267 = vpack.c.bf16 %v220, %v217
  %v268 = vpack.c.bf16 %v228, %v225
  %v269 = vpack.c.bf16 %v236, %v233
  %v270 = vpack.c.bf16 %v244, %v241
  %v287 = vunpack.c.l.b16 %v247
  %v288 = vunpack.c.l.b16 %v248
  %v289 = vunpack.c.l.b16 %v249
  %v290 = vunpack.c.l.b16 %v250
  %v291 = vunpack.c.l.b16 %v251
  %v292 = vunpack.c.l.b16 %v252
  %v293 = vunpack.c.l.b16 %v253
  %v294 = vunpack.c.l.b16 %v254
  %v295 = vunpack.c.l.b16 %v255
  %v296 = vunpack.c.l.b16 %v256
  %v297 = vunpack.c.l.b16 %v257
  %v298 = vunpack.c.l.b16 %v258
  %v299 = vunpack.c.l.b16 %v259
  %v300 = vunpack.c.l.b16 %v260
  %v301 = vunpack.c.l.b16 %v261
  %v302 = vunpack.c.l.b16 %v262
  %v303 = vpack.c.b16 %v288, %v287
  %v304 = vpack.c.b16 %v290, %v289
  %v305 = vpack.c.b16 %v292, %v291
  %v306 = vpack.c.b16 %v294, %v293
  %v307 = vpack.c.b16 %v296, %v295
  %v308 = vpack.c.b16 %v298, %v297
  %v309 = vpack.c.b16 %v300, %v299
  %v310 = vpack.c.b16 %v302, %v301
  %319 = vmatprep.subr.bf16.mxu0 0
  %320 = vmatpush1.bf16.msra.mxu0 %v263
  %321 = vmatprep.subr.bf16.mxu0 0
  %322 = vmatpush1.bf16.msra.mxu0 %v264
  %323 = vmatprep.subr.bf16.mxu0 0
  %324 = vmatpush1.bf16.msra.mxu0 %v265
  %325 = vmatprep.subr.bf16.mxu0 0
  %326 = vmatpush1.bf16.msra.mxu0 %v266
  %327 = vmatprep.subr.bf16.mxu0 0
  %328 = vmatpush1.bf16.msra.mxu0 %v267
  %329 = vmatprep.subr.bf16.mxu0 0
  %330 = vmatpush1.bf16.msra.mxu0 %v268
  %331 = vmatprep.subr.bf16.mxu0 0
  %332 = vmatpush1.bf16.msra.mxu0 %v269
  %333 = vmatprep.subr.bf16.mxu0 0
  %334 = vmatpush1.bf16.msra.mxu0 %v270
  %335 = vmatprep.subr.bf16.mxu0 0
  %336 = vmatpush1.bf16.msra.mxu0 0
  %337 = vmatprep.subr.bf16.mxu0 0
  %338 = vmatpush1.bf16.msra.mxu0 0
  %339 = vmatprep.subr.bf16.mxu0 0
  %340 = vmatpush1.bf16.msra.mxu0 0
  %341 = vmatprep.subr.bf16.mxu0 0
  %342 = vmatpush1.bf16.msra.mxu0 0
  %343 = vmatprep.subr.bf16.mxu0 0
  %344 = vmatpush1.bf16.msra.mxu0 0
  %345 = vmatprep.subr.bf16.mxu0 0
  %346 = vmatpush1.bf16.msra.mxu0 0
  %347 = vmatprep.subr.bf16.mxu0 0
  %348 = vmatpush1.bf16.msra.mxu0 0
  %349 = vmatprep.subr.bf16.mxu0 0
  %350 = vmatpush1.bf16.msra.mxu0 0
  %351 = vmatprep.mubr.bf16.mxu0 0
  %352 = vmatmul.mubr.bf16.gmra.mrb[0].mxu0 %v303
  %v353 = vpop.f32.mrb[0].mxu0
  %v354 = vadd.f32 0.0, %v353
  %v355 = vpop.f32.mrb[0].mxu0
  %v356 = vpop.f32.mrb[0].mxu0
  %v357 = vadd.f32 0.0, %v356
  %v358 = vpop.f32.mrb[0].mxu0
  %359 = vmatprep.mubr.bf16.mxu0 0
  %360 = vmatmul.mubr.bf16.gmra.mrb[0].mxu0 %v304
  %v361 = vpop.f32.mrb[0].mxu0
  %v362 = vadd.f32 0.0, %v361
  %v363 = vpop.f32.mrb[0].mxu0
  %v364 = vpop.f32.mrb[0].mxu0
  %v365 = vadd.f32 0.0, %v364
  %v366 = vpop.f32.mrb[0].mxu0
  %367 = vmatprep.mubr.bf16.mxu0 0
  %368 = vmatmul.mubr.bf16.gmra.mrb[0].mxu0 %v305
  %v369 = vpop.f32.mrb[0].mxu0
  %v370 = vadd.f32 0.0, %v369
  %v371 = vpop.f32.mrb[0].mxu0
  %v372 = vpop.f32.mrb[0].mxu0
  %v373 = vadd.f32 0.0, %v372
  %v374 = vpop.f32.mrb[0].mxu0
  %375 = vmatprep.mubr.bf16.mxu0 0
  %376 = vmatmul.mubr.bf16.gmra.mrb[0].mxu0 %v306
  %v377 = vpop.f32.mrb[0].mxu0
  %v378 = vadd.f32 0.0, %v377
  %v379 = vpop.f32.mrb[0].mxu0
  %v380 = vpop.f32.mrb[0].mxu0
  %v381 = vadd.f32 0.0, %v380
  %v382 = vpop.f32.mrb[0].mxu0
  %383 = vmatprep.mubr.bf16.mxu0 0
  %384 = vmatmul.mubr.bf16.gmra.mrb[0].mxu0 %v307
  %v385 = vpop.f32.mrb[0].mxu0
  %v386 = vadd.f32 0.0, %v385
  %v387 = vpop.f32.mrb[0].mxu0
  %v388 = vpop.f32.mrb[0].mxu0
  %v389 = vadd.f32 0.0, %v388
  %v390 = vpop.f32.mrb[0].mxu0
  %391 = vmatprep.mubr.bf16.mxu0 0
  %392 = vmatmul.mubr.bf16.gmra.mrb[0].mxu0 %v308
  %v393 = vpop.f32.mrb[0].mxu0
  %v394 = vadd.f32 0.0, %v393
  %v395 = vpop.f32.mrb[0].mxu0
  %v396 = vpop.f32.mrb[0].mxu0
  %v397 = vadd.f32 0.0, %v396
  %v398 = vpop.f32.mrb[0].mxu0
  %399 = vmatprep.mubr.bf16.mxu0 0
  %400 = vmatmul.mubr.bf16.gmra.mrb[0].mxu0 %v309
  %v401 = vpop.f32.mrb[0].mxu0
  %v402 = vadd.f32 0.0, %v401
  %v403 = vpop.f32.mrb[0].mxu0
  %v404 = vpop.f32.mrb[0].mxu0
  %v405 = vadd.f32 0.0, %v404
  %v406 = vpop.f32.mrb[0].mxu0
  %407 = vmatprep.mubr.bf16.mxu0 0
  %408 = vmatmul.mubr.bf16.gmra.mrb[0].mxu0 %v310
  %v409 = vpop.f32.mrb[0].mxu0
  %v410 = vadd.f32 0.0, %v409
  %v411 = vpop.f32.mrb[0].mxu0
  %v412 = vpop.f32.mrb[0].mxu0
  %v413 = vadd.f32 0.0, %v412
  %v414 = vpop.f32.mrb[0].mxu0
  %415 = vdwg.mxu0
  %p416 = scmp.eq.s32.totalorder 0, 0
  // Predicated region
  $region14: #{aneci_forward_padded.3} parent=0 // pred_check
    %p417 = pneg %p416
  $region15: #{aneci_forward_padded.3} parent=0 // pred_check_branch
    %419 = sbr.rel (%p417) target = $region17
  $region16: #{aneci_forward_padded.3} parent=0 // pred_region
    %420 = vst [vmem:[#allocation2] sm:$0xff] %v354
    %421 = vst [vmem:[#allocation2 + $0x8] sm:$0xff] %v357
    %422 = vst [vmem:[#allocation2 + $0x10] sm:$0xff] %v362
    %423 = vst [vmem:[#allocation2 + $0x18] sm:$0xff] %v365
    %424 = vst [vmem:[#allocation2 + $0x20] sm:$0xff] %v370
    %425 = vst [vmem:[#allocation2 + $0x28] sm:$0xff] %v373
    %426 = vst [vmem:[#allocation2 + $0x30] sm:$0xff] %v378
    %427 = vst [vmem:[#allocation2 + $0x38] sm:$0xff] %v381
    %428 = vst [vmem:[#allocation2 + $0x40] sm:$0xff] %v386
    %429 = vst [vmem:[#allocation2 + $0x48] sm:$0xff] %v389
    %430 = vst [vmem:[#allocation2 + $0x50] sm:$0xff] %v394
    %431 = vst [vmem:[#allocation2 + $0x58] sm:$0xff] %v397
    %432 = vst [vmem:[#allocation2 + $0x60] sm:$0xff] %v402
    %433 = vst [vmem:[#allocation2 + $0x68] sm:$0xff] %v405
    %434 = vst [vmem:[#allocation2 + $0x70] sm:$0xff] %v410
    %435 = vst [vmem:[#allocation2 + $0x78] sm:$0xff] %v413
  $region17: #{aneci_forward_padded.3} parent=0 // pred_fallthru
    _
  %p436 = scmp.ne.s32.totalorder 0, 0
  // Predicated region
  $region18: #{aneci_forward_padded.3} parent=0 // pred_check
    %p437 = pneg %p436
  $region19: #{aneci_forward_padded.3} parent=0 // pred_check_branch
    %439 = sbr.rel (%p437) target = $region21
  $region20: #{aneci_forward_padded.3} parent=0 // pred_region
    %v440 = vld [vmem:[#allocation2] sm:$0xff]
    %v441 = vld [vmem:[#allocation2 + $0x8] sm:$0xff]
    %v442 = vld [vmem:[#allocation2 + $0x10] sm:$0xff]
    %v443 = vld [vmem:[#allocation2 + $0x18] sm:$0xff]
    %v444 = vld [vmem:[#allocation2 + $0x20] sm:$0xff]
    %v445 = vld [vmem:[#allocation2 + $0x28] sm:$0xff]
    %v446 = vld [vmem:[#allocation2 + $0x30] sm:$0xff]
    %v447 = vld [vmem:[#allocation2 + $0x38] sm:$0xff]
    %v448 = vld [vmem:[#allocation2 + $0x40] sm:$0xff]
    %v449 = vld [vmem:[#allocation2 + $0x48] sm:$0xff]
    %v450 = vld [vmem:[#allocation2 + $0x50] sm:$0xff]
    %v451 = vld [vmem:[#allocation2 + $0x58] sm:$0xff]
    %v452 = vld [vmem:[#allocation2 + $0x60] sm:$0xff]
    %v453 = vld [vmem:[#allocation2 + $0x68] sm:$0xff]
    %v454 = vld [vmem:[#allocation2 + $0x70] sm:$0xff]
    %v455 = vld [vmem:[#allocation2 + $0x78] sm:$0xff]
    %v456 = vadd.f32 %v440, %v354
    %v457 = vadd.f32 %v441, %v357
    %v458 = vadd.f32 %v442, %v362
    %v459 = vadd.f32 %v443, %v365
    %v460 = vadd.f32 %v444, %v370
    %v461 = vadd.f32 %v445, %v373
    %v462 = vadd.f32 %v446, %v378
    %v463 = vadd.f32 %v447, %v381
    %v464 = vadd.f32 %v448, %v386
    %v465 = vadd.f32 %v449, %v389
    %v466 = vadd.f32 %v450, %v394
    %v467 = vadd.f32 %v451, %v397
    %v468 = vadd.f32 %v452, %v402
    %v469 = vadd.f32 %v453, %v405
    %v470 = vadd.f32 %v454, %v410
    %v471 = vadd.f32 %v455, %v413
    %472 = vst [vmem:[#allocation2] sm:$0xff] %v456
    %473 = vst [vmem:[#allocation2 + $0x8] sm:$0xff] %v457
    %474 = vst [vmem:[#allocation2 + $0x10] sm:$0xff] %v458
    %475 = vst [vmem:[#allocation2 + $0x18] sm:$0xff] %v459
    %476 = vst [vmem:[#allocation2 + $0x20] sm:$0xff] %v460
    %477 = vst [vmem:[#allocation2 + $0x28] sm:$0xff] %v461
    %478 = vst [vmem:[#allocation2 + $0x30] sm:$0xff] %v462
    %479 = vst [vmem:[#allocation2 + $0x38] sm:$0xff] %v463
    %480 = vst [vmem:[#allocation2 + $0x40] sm:$0xff] %v464
    %481 = vst [vmem:[#allocation2 + $0x48] sm:$0xff] %v465
    %482 = vst [vmem:[#allocation2 + $0x50] sm:$0xff] %v466
    %483 = vst [vmem:[#allocation2 + $0x58] sm:$0xff] %v467
    %484 = vst [vmem:[#allocation2 + $0x60] sm:$0xff] %v468
    %485 = vst [vmem:[#allocation2 + $0x68] sm:$0xff] %v469
    %486 = vst [vmem:[#allocation2 + $0x70] sm:$0xff] %v470
    %487 = vst [vmem:[#allocation2 + $0x78] sm:$0xff] %v471
  $region21: #{aneci_forward_padded.3} parent=0 // pred_fallthru
    _
  // Predicated region
  $region22: #{aneci_forward_padded.3} parent=0 // pred_check
    %p488 = pneg %p416
  $region23: #{aneci_forward_padded.3} parent=0 // pred_check_branch
    %490 = sbr.rel (%p488) target = $region25
  $region24: #{aneci_forward_padded.3} parent=0 // pred_region
    %v491 = vld [vmem:[#allocation2] sm:$0xff]
    %v492 = vld [vmem:[#allocation2 + $0x8] sm:$0xff]
    %v493 = vld [vmem:[#allocation2 + $0x10] sm:$0xff]
    %v494 = vld [vmem:[#allocation2 + $0x18] sm:$0xff]
    %v495 = vld [vmem:[#allocation2 + $0x20] sm:$0xff]
    %v496 = vld [vmem:[#allocation2 + $0x28] sm:$0xff]
    %v497 = vld [vmem:[#allocation2 + $0x30] sm:$0xff]
    %v498 = vld [vmem:[#allocation2 + $0x38] sm:$0xff]
    %v499 = vld [vmem:[#allocation2 + $0x40] sm:$0xff]
    %v500 = vld [vmem:[#allocation2 + $0x48] sm:$0xff]
    %v501 = vld [vmem:[#allocation2 + $0x50] sm:$0xff]
    %v502 = vld [vmem:[#allocation2 + $0x58] sm:$0xff]
    %v503 = vld [vmem:[#allocation2 + $0x60] sm:$0xff]
    %v504 = vld [vmem:[#allocation2 + $0x68] sm:$0xff]
    %v505 = vld [vmem:[#allocation2 + $0x70] sm:$0xff]
    %v506 = vld [vmem:[#allocation2 + $0x78] sm:$0xff]
    %vm507 = vcmp.gt.f32.partialorder %v491, 0.0
    %vm508 = vcmp.gt.f32.partialorder %v492, 0.0
    %vm509 = vcmp.gt.f32.partialorder %v493, 0.0
    %vm510 = vcmp.gt.f32.partialorder %v494, 0.0
    %vm511 = vcmp.gt.f32.partialorder %v495, 0.0
    %vm512 = vcmp.gt.f32.partialorder %v496, 0.0
    %vm513 = vcmp.gt.f32.partialorder %v497, 0.0
    %vm514 = vcmp.gt.f32.partialorder %v498, 0.0
    %vm515 = vcmp.gt.f32.partialorder %v499, 0.0
    %vm516 = vcmp.gt.f32.partialorder %v500, 0.0
    %vm517 = vcmp.gt.f32.partialorder %v501, 0.0
    %vm518 = vcmp.gt.f32.partialorder %v502, 0.0
    %vm519 = vcmp.gt.f32.partialorder %v503, 0.0
    %vm520 = vcmp.gt.f32.partialorder %v504, 0.0
    %vm521 = vcmp.gt.f32.partialorder %v505, 0.0
    %vm522 = vcmp.gt.f32.partialorder %v506, 0.0
    %v523 = vmul.f32 %v491, 0.01
    %v524 = vmul.f32 %v492, 0.01
    %v525 = vmul.f32 %v493, 0.01
    %v526 = vmul.f32 %v494, 0.01
    %v527 = vmul.f32 %v495, 0.01
    %v528 = vmul.f32 %v496, 0.01
    %v529 = vmul.f32 %v497, 0.01
    %v530 = vmul.f32 %v498, 0.01
    %v531 = vmul.f32 %v499, 0.01
    %v532 = vmul.f32 %v500, 0.01
    %v533 = vmul.f32 %v501, 0.01
    %v534 = vmul.f32 %v502, 0.01
    %v535 = vmul.f32 %v503, 0.01
    %v536 = vmul.f32 %v504, 0.01
    %v537 = vmul.f32 %v505, 0.01
    %v538 = vmul.f32 %v506, 0.01
    %v539 = vsel %vm507, %v491, %v523
    %v540 = vsel %vm508, %v492, %v524
    %v541 = vsel %vm509, %v493, %v525
    %v542 = vsel %vm510, %v494, %v526
    %v543 = vsel %vm511, %v495, %v527
    %v544 = vsel %vm512, %v496, %v528
    %v545 = vsel %vm513, %v497, %v529
    %v546 = vsel %vm514, %v498, %v530
    %v547 = vsel %vm515, %v499, %v531
    %v548 = vsel %vm516, %v500, %v532
    %v549 = vsel %vm517, %v501, %v533
    %v550 = vsel %vm518, %v502, %v534
    %v551 = vsel %vm519, %v503, %v535
    %v552 = vsel %vm520, %v504, %v536
    %v553 = vsel %vm521, %v505, %v537
    %v554 = vsel %vm522, %v506, %v538
    %555 = vst [vmem:[%s3] sm:$0xff] %v539
    %556 = vst [vmem:[%s3 + $0x8] sm:$0xff] %v540
    %557 = vst [vmem:[%s3 + $0x10] sm:$0xff] %v541
    %558 = vst [vmem:[%s3 + $0x18] sm:$0xff] %v542
    %559 = vst [vmem:[%s3 + $0x20] sm:$0xff] %v543
    %560 = vst [vmem:[%s3 + $0x28] sm:$0xff] %v544
    %561 = vst [vmem:[%s3 + $0x30] sm:$0xff] %v545
    %562 = vst [vmem:[%s3 + $0x38] sm:$0xff] %v546
    %563 = vst [vmem:[%s3 + $0x40] sm:$0xff] %v547
    %564 = vst [vmem:[%s3 + $0x48] sm:$0xff] %v548
    %565 = vst [vmem:[%s3 + $0x50] sm:$0xff] %v549
    %566 = vst [vmem:[%s3 + $0x58] sm:$0xff] %v550
    %567 = vst [vmem:[%s3 + $0x60] sm:$0xff] %v551
    %568 = vst [vmem:[%s3 + $0x68] sm:$0xff] %v552
    %569 = vst [vmem:[%s3 + $0x70] sm:$0xff] %v553
    %570 = vst [vmem:[%s3 + $0x78] sm:$0xff] %v554
    %v571 = vlaneseq
    %v572 = vand.u32 %v571, 127
    %vm573 = vcmp.lt.s32.totalorder %v572, 8
    %v574 = vsel %vm573, %v539, -inf
    %v575 = vsel %vm573, %v540, -inf
    %v576 = vsel %vm573, %v541, -inf
    %v577 = vsel %vm573, %v542, -inf
    %v578 = vsel %vm573, %v543, -inf
    %v579 = vsel %vm573, %v544, -inf
    %v580 = vsel %vm573, %v545, -inf
    %v581 = vsel %vm573, %v546, -inf
    %v582 = vsel %vm573, %v547, -inf
    %v583 = vsel %vm573, %v548, -inf
    %v584 = vsel %vm573, %v549, -inf
    %v585 = vsel %vm573, %v550, -inf
    %v586 = vsel %vm573, %v551, -inf
    %v587 = vsel %vm573, %v552, -inf
    %v588 = vsel %vm573, %v553, -inf
    %v589 = vsel %vm573, %v554, -inf
    %590 = vmax.xlane.f32.xlu0 %v574
    %v591 = vpop.xlane.xlu0 %590
    %592 = vmax.xlane.f32.xlu0 %v575
    %v593 = vpop.xlane.xlu0 %592
    %594 = vmax.xlane.f32.xlu0 %v576
    %v595 = vpop.xlane.xlu0 %594
    %596 = vmax.xlane.f32.xlu0 %v577
    %v597 = vpop.xlane.xlu0 %596
    %598 = vmax.xlane.f32.xlu0 %v578
    %v599 = vpop.xlane.xlu0 %598
    %600 = vmax.xlane.f32.xlu0 %v579
    %v601 = vpop.xlane.xlu0 %600
    %602 = vmax.xlane.f32.xlu0 %v580
    %v603 = vpop.xlane.xlu0 %602
    %604 = vmax.xlane.f32.xlu0 %v581
    %v605 = vpop.xlane.xlu0 %604
    %606 = vmax.xlane.f32.xlu0 %v582
    %v607 = vpop.xlane.xlu0 %606
    %608 = vmax.xlane.f32.xlu0 %v583
    %v609 = vpop.xlane.xlu0 %608
    %610 = vmax.xlane.f32.xlu0 %v584
    %v611 = vpop.xlane.xlu0 %610
    %612 = vmax.xlane.f32.xlu0 %v585
    %v613 = vpop.xlane.xlu0 %612
    %614 = vmax.xlane.f32.xlu0 %v586
    %v615 = vpop.xlane.xlu0 %614
    %616 = vmax.xlane.f32.xlu0 %v587
    %v617 = vpop.xlane.xlu0 %616
    %618 = vmax.xlane.f32.xlu0 %v588
    %v619 = vpop.xlane.xlu0 %618
    %620 = vmax.xlane.f32.xlu0 %v589
    %v621 = vpop.xlane.xlu0 %620
    %v622 = vsub.f32 %v574, %v591
    %v623 = vsub.f32 %v575, %v593
    %v624 = vsub.f32 %v576, %v595
    %v625 = vsub.f32 %v577, %v597
    %v626 = vsub.f32 %v578, %v599
    %v627 = vsub.f32 %v579, %v601
    %v628 = vsub.f32 %v580, %v603
    %v629 = vsub.f32 %v581, %v605
    %v630 = vsub.f32 %v582, %v607
    %v631 = vsub.f32 %v583, %v609
    %v632 = vsub.f32 %v584, %v611
    %v633 = vsub.f32 %v585, %v613
    %v634 = vsub.f32 %v586, %v615
    %v635 = vsub.f32 %v587, %v617
    %v636 = vsub.f32 %v588, %v619
    %v637 = vsub.f32 %v589, %v621
    %v638 = vmul.f32 %v622, 1.442695
    %v639 = vpow.pop %v638
    %v640 = vmul.f32 %v623, 1.442695
    %v641 = vpow.pop %v640
    %v642 = vmul.f32 %v624, 1.442695
    %v643 = vpow.pop %v642
    %v644 = vmul.f32 %v625, 1.442695
    %v645 = vpow.pop %v644
    %v646 = vmul.f32 %v626, 1.442695
    %v647 = vpow.pop %v646
    %v648 = vmul.f32 %v627, 1.442695
    %v649 = vpow.pop %v648
    %v650 = vmul.f32 %v628, 1.442695
    %v651 = vpow.pop %v650
    %v652 = vmul.f32 %v629, 1.442695
    %v653 = vpow.pop %v652
    %v654 = vmul.f32 %v630, 1.442695
    %v655 = vpow.pop %v654
    %v656 = vmul.f32 %v631, 1.442695
    %v657 = vpow.pop %v656
    %v658 = vmul.f32 %v632, 1.442695
    %v659 = vpow.pop %v658
    %v660 = vmul.f32 %v633, 1.442695
    %v661 = vpow.pop %v660
    %v662 = vmul.f32 %v634, 1.442695
    %v663 = vpow.pop %v662
    %v664 = vmul.f32 %v635, 1.442695
    %v665 = vpow.pop %v664
    %v666 = vmul.f32 %v636, 1.442695
    %v667 = vpow.pop %v666
    %v668 = vmul.f32 %v637, 1.442695
    %v669 = vpow.pop %v668
    %v670 = vsel %vm573, %v639, 0.0
    %v671 = vsel %vm573, %v641, 0.0
    %v672 = vsel %vm573, %v643, 0.0
    %v673 = vsel %vm573, %v645, 0.0
    %v674 = vsel %vm573, %v647, 0.0
    %v675 = vsel %vm573, %v649, 0.0
    %v676 = vsel %vm573, %v651, 0.0
    %v677 = vsel %vm573, %v653, 0.0
    %v678 = vsel %vm573, %v655, 0.0
    %v679 = vsel %vm573, %v657, 0.0
    %v680 = vsel %vm573, %v659, 0.0
    %v681 = vsel %vm573, %v661, 0.0
    %v682 = vsel %vm573, %v663, 0.0
    %v683 = vsel %vm573, %v665, 0.0
    %v684 = vsel %vm573, %v667, 0.0
    %v685 = vsel %vm573, %v669, 0.0
    %686 = vadd.xlane.f32.xlu0 %v670
    %v687 = vpop.xlane.xlu0 %686
    %688 = vadd.xlane.f32.xlu0 %v671
    %v689 = vpop.xlane.xlu0 %688
    %690 = vadd.xlane.f32.xlu0 %v672
    %v691 = vpop.xlane.xlu0 %690
    %692 = vadd.xlane.f32.xlu0 %v673
    %v693 = vpop.xlane.xlu0 %692
    %694 = vadd.xlane.f32.xlu0 %v674
    %v695 = vpop.xlane.xlu0 %694
    %696 = vadd.xlane.f32.xlu0 %v675
    %v697 = vpop.xlane.xlu0 %696
    %698 = vadd.xlane.f32.xlu0 %v676
    %v699 = vpop.xlane.xlu0 %698
    %700 = vadd.xlane.f32.xlu0 %v677
    %v701 = vpop.xlane.xlu0 %700
    %702 = vadd.xlane.f32.xlu0 %v678
    %v703 = vpop.xlane.xlu0 %702
    %704 = vadd.xlane.f32.xlu0 %v679
    %v705 = vpop.xlane.xlu0 %704
    %706 = vadd.xlane.f32.xlu0 %v680
    %v707 = vpop.xlane.xlu0 %706
    %708 = vadd.xlane.f32.xlu0 %v681
    %v709 = vpop.xlane.xlu0 %708
    %710 = vadd.xlane.f32.xlu0 %v682
    %v711 = vpop.xlane.xlu0 %710
    %712 = vadd.xlane.f32.xlu0 %v683
    %v713 = vpop.xlane.xlu0 %712
    %714 = vadd.xlane.f32.xlu0 %v684
    %v715 = vpop.xlane.xlu0 %714
    %716 = vadd.xlane.f32.xlu0 %v685
    %v717 = vpop.xlane.xlu0 %716
    %v718 = vrcp.pop %v687
    %v719 = vrcp.pop %v689
    %v720 = vrcp.pop %v691
    %v721 = vrcp.pop %v693
    %v722 = vrcp.pop %v695
    %v723 = vrcp.pop %v697
    %v724 = vrcp.pop %v699
    %v725 = vrcp.pop %v701
    %v726 = vrcp.pop %v703
    %v727 = vrcp.pop %v705
    %v728 = vrcp.pop %v707
    %v729 = vrcp.pop %v709
    %v730 = vrcp.pop %v711
    %v731 = vrcp.pop %v713
    %v732 = vrcp.pop %v715
    %v733 = vrcp.pop %v717
    %v734 = vmul.f32 %v670, %v718
    %v735 = vmul.f32 %v671, %v719
    %v736 = vmul.f32 %v672, %v720
    %v737 = vmul.f32 %v673, %v721
    %v738 = vmul.f32 %v674, %v722
    %v739 = vmul.f32 %v675, %v723
    %v740 = vmul.f32 %v676, %v724
    %v741 = vmul.f32 %v677, %v725
    %v742 = vmul.f32 %v678, %v726
    %v743 = vmul.f32 %v679, %v727
    %v744 = vmul.f32 %v680, %v728
    %v745 = vmul.f32 %v681, %v729
    %v746 = vmul.f32 %v682, %v730
    %v747 = vmul.f32 %v683, %v731
    %v748 = vmul.f32 %v684, %v732
    %v749 = vmul.f32 %v685, %v733
    %750 = vst [vmem:[%s4] sm:$0xff] %v734
    %751 = vst [vmem:[%s4 + $0x8] sm:$0xff] %v735
    %752 = vst [vmem:[%s4 + $0x10] sm:$0xff] %v736
    %753 = vst [vmem:[%s4 + $0x18] sm:$0xff] %v737
    %754 = vst [vmem:[%s4 + $0x20] sm:$0xff] %v738
    %755 = vst [vmem:[%s4 + $0x28] sm:$0xff] %v739
    %756 = vst [vmem:[%s4 + $0x30] sm:$0xff] %v740
    %757 = vst [vmem:[%s4 + $0x38] sm:$0xff] %v741
    %758 = vst [vmem:[%s4 + $0x40] sm:$0xff] %v742
    %759 = vst [vmem:[%s4 + $0x48] sm:$0xff] %v743
    %760 = vst [vmem:[%s4 + $0x50] sm:$0xff] %v744
    %761 = vst [vmem:[%s4 + $0x58] sm:$0xff] %v745
    %762 = vst [vmem:[%s4 + $0x60] sm:$0xff] %v746
    %763 = vst [vmem:[%s4 + $0x68] sm:$0xff] %v747
    %764 = vst [vmem:[%s4 + $0x70] sm:$0xff] %v748
    %765 = vst [vmem:[%s4 + $0x78] sm:$0xff] %v749
  $region25: #{aneci_forward_padded.3} parent=0 // pred_fallthru
    _
  // Predicated region
  $region26: #{aneci_forward_padded.3} parent=0 // pred_check
    _
  $region27: #{aneci_forward_padded.3} parent=0 // pred_check_branch
    %767 = sbr.rel (0) target = $region29
  $region28: #{aneci_forward_padded.3} parent=0 // pred_region
    _
  $region29: #{aneci_forward_padded.3} parent=0 // pred_fallthru
    _
  // Predicated region
  $region30: #{aneci_forward_padded.3} parent=0 // pred_check
    _
  $region31: #{aneci_forward_padded.3} parent=0 // pred_check_branch
    %769 = sbr.rel (0) target = $region33
  $region32: #{aneci_forward_padded.3} parent=0 // pred_region
    _
  $region33: #{aneci_forward_padded.3} parent=0 // pred_fallthru
    _
  // Predicated region
  $region34: #{aneci_forward_padded.3} parent=0 // pred_check
    _
  $region35: #{aneci_forward_padded.3} parent=0 // pred_check_branch
    %771 = sbr.rel (0) target = $region37
  $region36: #{aneci_forward_padded.3} parent=0 // pred_region
    _
  $region37: #{aneci_forward_padded.3} parent=0 // pred_fallthru
    _
  // Predicated region
  $region38: #{aneci_forward_padded.3} parent=0 // pred_check
    _
  $region39: #{aneci_forward_padded.3} parent=0 // pred_check_branch
    %773 = sbr.rel (0) target = $region41
  $region40: #{aneci_forward_padded.3} parent=0 // pred_region
    _
  $region41: #{aneci_forward_padded.3} parent=0 // pred_fallthru
    _

</llo_original>
